<compile_context>
chip_gen: v6e
topology: v6e:2x2x1
jax: 0.10.0
libtpu: 0.0.40
codegen_flags: <defaults>
</compile_context>

<pallas_src>
import jax
import jax.numpy as jnp
import numpy as np
from jax import lax
from jax.experimental import pallas as pl
from jax.experimental.pallas import tpu as pltpu


def _round_up(x, m):
    return ((x + m - 1) // m) * m


def _make_kernel(S, E, n_taps, TB):
    pmax = (n_taps - 1) // 2
    K = n_taps * E

    def kernel(lens_ref, emb_ref, wc_ref, bc_ref, wh_ref, bh_ref,
               wf_ref, bf_ref, out_ref):
        emb = emb_ref[...]                                      # (TB, S, E) bf16

        # --- build the conv halo in VMEM (no wrapper-side HBM pad) ---
        if pmax > 0:
            halo = jnp.zeros((TB, pmax, E), dtype=emb.dtype)
            emb_pad = jnp.concatenate([halo, emb, halo], axis=1)  # (TB, S+2P, E)
        else:
            emb_pad = emb

        # --- im2col: one (TB*S, n_taps*E) tile reused by all filter sizes ---
        if n_taps > 1:
            cols = [emb_pad[:, d:d + S, :] for d in range(n_taps)]
            x = jnp.concatenate(cols, axis=-1)                   # (TB, S, K)
        else:
            x = emb_pad
        x = x.reshape(TB * S, K)

        # --- fused conv over all filter sizes: single MXU matmul + ReLU ---
        conv = jnp.dot(x, wc_ref[...], preferred_element_type=jnp.float32)
        cnns = jnp.maximum(conv + bc_ref[...], 0.0)              # (TB*S, Fp) f32

        # --- hidden linear layer (no activation, per the reference module) ---
        hidden = jnp.dot(cnns.astype(wh_ref.dtype), wh_ref[...],
                         preferred_element_type=jnp.float32) + bh_ref[...]

        # --- length mask + max over the sequence, per batch element ---
        Hp = hidden.shape[-1]
        hidden3 = hidden.reshape(TB, S, Hp)
        lens = lens_ref[...].reshape(TB, 1, 1)                   # int32
        pos = lax.broadcasted_iota(jnp.int32, (TB, S, 1), 1)
        mask = (pos < lens).astype(jnp.float32)                  # (TB, S, 1)
        vec = jnp.max(hidden3 - (1.0 - mask) * 1e23, axis=1)     # (TB, Hp) f32

        # TODO(synk): dropout is identity at inference time; no RNG applied.
        out = jnp.dot(vec.astype(wf_ref.dtype), wf_ref[...],
                      preferred_element_type=jnp.float32) + bf_ref[...]
        out_ref[...] = out.astype(out_ref.dtype)                 # (TB, Op) lane-dense

    return kernel


def _prepare_params(params, filter_sizes, lane=128):
    """Fuse conv weights across filter sizes and pad feature dims to 128 lanes."""
    fs_list = tuple(filter_sizes)
    pmax = max((fs - 1) // 2 for fs in fs_list)
    n_taps = 2 * pmax + 1
    E = params["embedding"].shape[1]
    F = params[f"conv{fs_list[0]}_w"].shape[-1]
    F_tot = len(fs_list) * F
    H = params["hidden_w"].shape[1]
    O = params["fc_w"].shape[1]
    Fp, Hp, Op = (_round_up(d, lane) for d in (F_tot, H, O))

    wc = jnp.zeros((n_taps, E, Fp), jnp.float32)
    bc = jnp.zeros((1, Fp), jnp.float32)
    for i, fs in enumerate(fs_list):
        p = (fs - 1) // 2
        wc = wc.at[pmax - p:pmax - p + fs, :, i * F:(i + 1) * F].set(
            params[f"conv{fs}_w"])
        bc = bc.at[:, i * F:(i + 1) * F].set(params[f"conv{fs}_b"])
    wc = wc.reshape(n_taps * E, Fp).astype(jnp.bfloat16)

    wh = jnp.zeros((Fp, Hp), jnp.float32).at[:F_tot, :H].set(
        params["hidden_w"]).astype(jnp.bfloat16)
    bh = jnp.zeros((1, Hp), jnp.float32).at[:, :H].set(params["hidden_b"])
    wf = jnp.zeros((Hp, Op), jnp.float32).at[:H, :O].set(
        params["fc_w"]).astype(jnp.bfloat16)
    bf = jnp.zeros((1, Op), jnp.float32).at[:, :O].set(params["fc_b"])
    return (wc, bc, wh, bh, wf, bf), (n_taps, Fp, Hp, Op)


def cnn1d_extra_layer_classifier(text, text_len, params, filter_sizes,
                                 block_b=None):
    """Forward pass. text: [S, B] int32 token ids; text_len: [B] int32."""
    if any(fs % 2 == 0 for fs in filter_sizes):
        raise ValueError(
            "filter_sizes must be odd: padding=(fs-1)//2 only yields "
            "same-length conv outputs (required by the torch.cat) for odd fs.")

    emb_table = params["embedding"]
    text_bs = text.T                                            # [B, S]
    # Embedding gather stays in JAX glue; matmul operands are bf16 (f32 acc).
    embedded = emb_table[text_bs].astype(jnp.bfloat16)          # [B, S, E]
    B, S, E = embedded.shape
    O = params["fc_w"].shape[-1]

    (wc, bc, wh, bh, wf, bf), (n_taps, Fp, Hp, Op) = _prepare_params(
        params, filter_sizes)
    K = n_taps * E

    # Batch tile: TB*S >= 256 fills the MXU M dimension (256x256 on v6e/v7x,
    # also fine for v5e's 128); multiple of 8 sublanes.  For large S*E, cap TB
    # so the double-buffered bf16 activation block stays well under VMEM
    # (64 MiB/TC on v7x vs 128 MiB on v5e/v6e).
    if block_b is None:
        block_b = _round_up(max(1, -(-256 // S)), 8)
        vmem_budget = 16 * 1024 * 1024
        max_tb = max(8, vmem_budget // max(1, 2 * S * E * 2))
        block_b = min(block_b, _round_up(max_tb, 8))
    TB = block_b
    Bp = _round_up(max(B, TB), TB)

    emb_in = jnp.zeros((Bp, S, E), jnp.bfloat16).at[:B].set(embedded)
    lens_in = jnp.zeros((Bp, 1), jnp.int32).at[:B, 0].set(
        text_len.astype(jnp.int32))

    kernel = _make_kernel(S, E, n_taps, TB)

    in_specs = [
        pl.BlockSpec((TB, 1), lambda i: (i, 0)),        # lengths
        pl.BlockSpec((TB, S, E), lambda i: (i, 0, 0)),  # embedded activations
        pl.BlockSpec((K, Fp), lambda i: (0, 0)),        # fused conv weight
        pl.BlockSpec((1, Fp), lambda i: (0, 0)),        # fused conv bias
        pl.BlockSpec((Fp, Hp), lambda i: (0, 0)),       # hidden weight
        pl.BlockSpec((1, Hp), lambda i: (0, 0)),        # hidden bias
        pl.BlockSpec((Hp, Op), lambda i: (0, 0)),       # fc weight
        pl.BlockSpec((1, Op), lambda i: (0, 0)),        # fc bias
    ]

    out = pl.pallas_call(
        kernel,
        out_shape=jax.ShapeDtypeStruct((Bp, Op), jnp.float32),
        grid=(Bp // TB,),
        in_specs=in_specs,
        out_specs=pl.BlockSpec((TB, Op), lambda i: (i, 0)),
        compiler_params=pltpu.CompilerParams(
            dimension_semantics=("parallel",)),
    )(lens_in, emb_in, wc, bc, wh, bh, wf, bf)
    return out[:B, :O]


def reference_forward(text, text_len, params, filter_sizes):
    """Pure-JAX reference mirroring the PyTorch module (same bf16 MXU inputs,
    f32 accumulation, as the kernel)."""
    emb = params["embedding"][text.T].astype(jnp.bfloat16)      # [B, S, E]
    B, S, E = emb.shape
    convs = []
    for fs in filter_sizes:
        pad = (fs - 1) // 2
        w = params[f"conv{fs}_w"].astype(jnp.bfloat16)          # [fs, E, F]
        b = params[f"conv{fs}_b"]
        x = jnp.pad(emb, ((0, 0), (pad, pad), (0, 0)))
        out = sum(jnp.einsum("bse,ef->bsf", x[:, k:k + S, :], w[k],
                             preferred_element_type=jnp.float32)
                  for k in range(fs)) + b
        convs.append(out)
    cnns = jax.nn.relu(jnp.concatenate(convs, -1))
    hidden = jnp.dot(cnns.astype(jnp.bfloat16),
                     params["hidden_w"].astype(jnp.bfloat16),
                     preferred_element_type=jnp.float32) + params["hidden_b"]
    mask = (jnp.arange(S)[None, :] < text_len[:, None]).astype(
        jnp.float32)[..., None]
    vec = jnp.max(hidden - (1.0 - mask) * 1e23, axis=1)
    return jnp.dot(vec.astype(jnp.bfloat16),
                   params["fc_w"].astype(jnp.bfloat16),
                   preferred_element_type=jnp.float32) + params["fc_b"]


def init_params(key, vocab_size, embedding_dim, n_filters, filter_sizes,
                linear_hidden_dim, output_dim, pad_idx):
    n_keys = 5 + 2 * len(filter_sizes)   # emb + (w,b) per conv + 4 linears
    ki = iter(jax.random.split(key, n_keys))
    params = {}
    emb = 0.1 * jax.random.normal(next(ki), (vocab_size, embedding_dim),
                                  jnp.float32)
    params["embedding"] = emb.at[pad_idx].set(0.0)   # padding_idx row zeroed
    for fs in filter_sizes:
        params[f"conv{fs}_w"] = 0.1 * jax.random.normal(
            next(ki), (fs, embedding_dim, n_filters), jnp.float32)
        params[f"conv{fs}_b"] = 0.05 * jax.random.normal(
            next(ki), (1, n_filters), jnp.float32)
    f_tot = len(filter_sizes) * n_filters
    params["hidden_w"] = 0.1 * jax.random.normal(
        next(ki), (f_tot, linear_hidden_dim), jnp.float32)
    params["hidden_b"] = 0.05 * jax.random.normal(
        next(ki), (1, linear_hidden_dim), jnp.float32)
    params["fc_w"] = 0.1 * jax.random.normal(
        next(ki), (linear_hidden_dim, output_dim), jnp.float32)
    params["fc_b"] = 0.05 * jax.random.normal(
        next(ki), (1, output_dim), jnp.float32)
    return params


if __name__ == "__main__":
    vocab_size = 50
    embedding_dim = 16
    n_filters = 8
    filter_sizes = (3, 5)           # odd sizes -> "same" length conv outputs
    linear_hidden_dim = 32
    output_dim = 4
    pad_idx = 0
    B, S = 2, 8

    key = jax.random.PRNGKey(0)
    k_param, k_text = jax.random.split(key)
    params = init_params(k_param, vocab_size, embedding_dim, n_filters,
                         filter_sizes, linear_hidden_dim, output_dim, pad_idx)

    # text is [seq_len, batch] int tokens, as in the PyTorch module.
    text = jax.random.randint(k_text, (S, B), 1, vocab_size, dtype=jnp.int32)
    text_len = jnp.array([8, 5], dtype=jnp.int32)

    out = cnn1d_extra_layer_classifier(text, text_len, params, filter_sizes)
    out = jax.block_until_ready(out)

    ref = reference_forward(text, text_len, params, filter_sizes)
    np.testing.assert_allclose(np.asarray(out), np.asarray(ref),
                               rtol=1e-2, atol=1e-3)
    print("KERNEL_OK")
</pallas_src>

<mosaic_0001>
module attributes {stable_mosaic.version = 11 : i64} {
  func.func @kernel(%arg0: i32, %arg1: memref<32x1xi32, #tpu.memory_space<vmem>>, %arg2: memref<32x8x16xbf16, #tpu.memory_space<vmem>>, %arg3: memref<80x128xbf16, #tpu.memory_space<vmem>>, %arg4: memref<1x128xf32, #tpu.memory_space<vmem>>, %arg5: memref<128x128xbf16, #tpu.memory_space<vmem>>, %arg6: memref<1x128xf32, #tpu.memory_space<vmem>>, %arg7: memref<128x128xbf16, #tpu.memory_space<vmem>>, %arg8: memref<1x128xf32, #tpu.memory_space<vmem>>, %arg9: memref<32x128xf32, #tpu.memory_space<vmem>>) attributes {dimension_semantics = [#tpu.dimension_semantics<parallel>], iteration_bounds = array<i64: 1>, scalar_prefetch = 0 : i64, scratch_operands = 0 : i64, tpu.core_type = #tpu.core_type<tc>, window_params = [{transform_indices = @transform_0, window_bounds = array<i64: 32, 1>}, {transform_indices = @transform_1, window_bounds = array<i64: 32, 8, 16>}, {pipeline_mode = #tpu.pipeline_mode<synchronous>, transform_indices = @transform_2, window_bounds = array<i64: 80, 128>}, {pipeline_mode = #tpu.pipeline_mode<synchronous>, transform_indices = @transform_3, window_bounds = array<i64: 1, 128>}, {pipeline_mode = #tpu.pipeline_mode<synchronous>, transform_indices = @transform_4, window_bounds = array<i64: 128, 128>}, {pipeline_mode = #tpu.pipeline_mode<synchronous>, transform_indices = @transform_5, window_bounds = array<i64: 1, 128>}, {pipeline_mode = #tpu.pipeline_mode<synchronous>, transform_indices = @transform_6, window_bounds = array<i64: 128, 128>}, {pipeline_mode = #tpu.pipeline_mode<synchronous>, transform_indices = @transform_7, window_bounds = array<i64: 1, 128>}, {transform_indices = @transform_8, window_bounds = array<i64: 32, 128>}]} {
    %c0 = arith.constant 0 : index
    %c0_0 = arith.constant 0 : index
    %c0_1 = arith.constant 0 : index
    %0 = vector.load %arg2[%c0, %c0_0, %c0_1] : memref<32x8x16xbf16, #tpu.memory_space<vmem>>, vector<32x8x16xbf16>
    %cst = arith.constant 0.000000e+00 : bf16
    %1 = vector.broadcast %cst : bf16 to vector<32x2x16xbf16>
    %2 = tpu.concatenate %1, %0, %1 in 1 : vector<32x2x16xbf16>, vector<32x8x16xbf16>, vector<32x2x16xbf16> -> vector<32x12x16xbf16>
    %3 = vector.extract_strided_slice %2 {offsets = [0, 0, 0], sizes = [32, 8, 16], strides = [1, 1, 1]} : vector<32x12x16xbf16> to vector<32x8x16xbf16>
    %4 = vector.extract_strided_slice %2 {offsets = [0, 1, 0], sizes = [32, 8, 16], strides = [1, 1, 1]} : vector<32x12x16xbf16> to vector<32x8x16xbf16>
    %5 = vector.extract_strided_slice %2 {offsets = [0, 2, 0], sizes = [32, 8, 16], strides = [1, 1, 1]} : vector<32x12x16xbf16> to vector<32x8x16xbf16>
    %6 = vector.extract_strided_slice %2 {offsets = [0, 3, 0], sizes = [32, 8, 16], strides = [1, 1, 1]} : vector<32x12x16xbf16> to vector<32x8x16xbf16>
    %7 = vector.extract_strided_slice %2 {offsets = [0, 4, 0], sizes = [32, 8, 16], strides = [1, 1, 1]} : vector<32x12x16xbf16> to vector<32x8x16xbf16>
    %8 = tpu.concatenate %3, %4, %5, %6, %7 in 2 : vector<32x8x16xbf16>, vector<32x8x16xbf16>, vector<32x8x16xbf16>, vector<32x8x16xbf16>, vector<32x8x16xbf16> -> vector<32x8x80xbf16>
    %9 = vector.shape_cast %8 : vector<32x8x80xbf16> to vector<256x80xbf16>
    %c0_2 = arith.constant 0 : index
    %c0_3 = arith.constant 0 : index
    %10 = vector.load %arg3[%c0_2, %c0_3] : memref<80x128xbf16, #tpu.memory_space<vmem>>, vector<80x128xbf16>
    %cst_4 = arith.constant dense<0.000000e+00> : vector<256x128xf32>
    %11 = tpu.matmul %9, %10, %cst_4 {dimension_numbers = #tpu.dot_dimension_numbers<[1], [0], [0], [1], [0, 0, 1, 1], [], []>} : vector<256x80xbf16>, vector<80x128xbf16>, vector<256x128xf32> -> vector<256x128xf32>
    %c0_5 = arith.constant 0 : index
    %c0_6 = arith.constant 0 : index
    %12 = vector.load %arg4[%c0_5, %c0_6] : memref<1x128xf32, #tpu.memory_space<vmem>>, vector<1x128xf32>
    %13 = vector.broadcast %12 : vector<1x128xf32> to vector<256x128xf32>
    %14 = arith.addf %11, %13 : vector<256x128xf32>
    %cst_7 = arith.constant 0.000000e+00 : f32
    %15 = vector.broadcast %cst_7 : f32 to vector<256x128xf32>
    %16 = arith.maximumf %14, %15 : vector<256x128xf32>
    %17 = arith.truncf %16 : vector<256x128xf32> to vector<256x128xbf16>
    %c0_8 = arith.constant 0 : index
    %c0_9 = arith.constant 0 : index
    %18 = vector.load %arg5[%c0_8, %c0_9] : memref<128x128xbf16, #tpu.memory_space<vmem>>, vector<128x128xbf16>
    %cst_10 = arith.constant dense<0.000000e+00> : vector<256x128xf32>
    %19 = tpu.matmul %17, %18, %cst_10 {dimension_numbers = #tpu.dot_dimension_numbers<[1], [0], [0], [1], [0, 0, 1, 1], [], []>} : vector<256x128xbf16>, vector<128x128xbf16>, vector<256x128xf32> -> vector<256x128xf32>
    %c0_11 = arith.constant 0 : index
    %c0_12 = arith.constant 0 : index
    %20 = vector.load %arg6[%c0_11, %c0_12] : memref<1x128xf32, #tpu.memory_space<vmem>>, vector<1x128xf32>
    %21 = vector.broadcast %20 : vector<1x128xf32> to vector<256x128xf32>
    %22 = arith.addf %19, %21 : vector<256x128xf32>
    %23 = vector.shape_cast %22 : vector<256x128xf32> to vector<32x8x128xf32>
    %c0_13 = arith.constant 0 : index
    %c0_14 = arith.constant 0 : index
    %24 = vector.load %arg1[%c0_13, %c0_14] : memref<32x1xi32, #tpu.memory_space<vmem>>, vector<32x1xi32>
    %25 = vector.shape_cast %24 : vector<32x1xi32> to vector<32x1x1xi32>
    %26 = tpu.iota {dimensions = array<i32: 1>} : vector<32x8x1xi32>
    %27 = vector.broadcast %25 : vector<32x1x1xi32> to vector<32x8x1xi32>
    %28 = arith.cmpi slt, %26, %27 : vector<32x8x1xi32>
    %29 = arith.extui %28 : vector<32x8x1xi1> to vector<32x8x1xi32>
    %30 = arith.sitofp %29 : vector<32x8x1xi32> to vector<32x8x1xf32>
    %cst_15 = arith.constant 1.000000e+00 : f32
    %31 = vector.broadcast %cst_15 : f32 to vector<32x8x1xf32>
    %32 = arith.subf %31, %30 : vector<32x8x1xf32>
    %cst_16 = arith.constant 9.99999977E+22 : f32
    %33 = vector.broadcast %cst_16 : f32 to vector<32x8x1xf32>
    %34 = arith.mulf %32, %33 : vector<32x8x1xf32>
    %35 = vector.broadcast %34 : vector<32x8x1xf32> to vector<32x8x128xf32>
    %36 = arith.subf %23, %35 : vector<32x8x128xf32>
    %cst_17 = arith.constant dense<0xFF800000> : vector<32x128xf32>
    %37 = vector.multi_reduction <maximumf>, %36, %cst_17 [1] : vector<32x8x128xf32> to vector<32x128xf32>
    %38 = arith.truncf %37 : vector<32x128xf32> to vector<32x128xbf16>
    %c0_18 = arith.constant 0 : index
    %c0_19 = arith.constant 0 : index
    %39 = vector.load %arg7[%c0_18, %c0_19] : memref<128x128xbf16, #tpu.memory_space<vmem>>, vector<128x128xbf16>
    %cst_20 = arith.constant dense<0.000000e+00> : vector<32x128xf32>
    %40 = tpu.matmul %38, %39, %cst_20 {dimension_numbers = #tpu.dot_dimension_numbers<[1], [0], [0], [1], [0, 0, 1, 1], [], []>} : vector<32x128xbf16>, vector<128x128xbf16>, vector<32x128xf32> -> vector<32x128xf32>
    %c0_21 = arith.constant 0 : index
    %c0_22 = arith.constant 0 : index
    %41 = vector.load %arg8[%c0_21, %c0_22] : memref<1x128xf32, #tpu.memory_space<vmem>>, vector<1x128xf32>
    %42 = vector.broadcast %41 : vector<1x128xf32> to vector<32x128xf32>
    %43 = arith.addf %40, %42 : vector<32x128xf32>
    %c0_23 = arith.constant 0 : index
    %c0_24 = arith.constant 0 : index
    %44 = vector.load %arg9[%c0_23, %c0_24] : memref<32x128xf32, #tpu.memory_space<vmem>>, vector<32x128xf32>
    tpu.vector_store %arg9[%c0_23, %c0_24], %43 {strides = array<i32>} : memref<32x128xf32, #tpu.memory_space<vmem>>, vector<32x128xf32>,
    return
  }
  func.func @transform_0(%arg0: i32) -> (i32, i32) {
    %c0_i32 = arith.constant 0 : i32
    %c0_i32_0 = arith.constant 0 : i32
    return %arg0, %c0_i32 : i32, i32
  }
  func.func @transform_1(%arg0: i32) -> (i32, i32, i32) {
    %c0_i32 = arith.constant 0 : i32
    %c0_i32_0 = arith.constant 0 : i32
    %c0_i32_1 = arith.constant 0 : i32
    return %arg0, %c0_i32, %c0_i32_0 : i32, i32, i32
  }
  func.func @transform_2(%arg0: i32) -> (i32, i32) {
    %c0_i32 = arith.constant 0 : i32
    %c0_i32_0 = arith.constant 0 : i32
    %c0_i32_1 = arith.constant 0 : i32
    return %c0_i32, %c0_i32_0 : i32, i32
  }
  func.func @transform_3(%arg0: i32) -> (i32, i32) {
    %c0_i32 = arith.constant 0 : i32
    %c0_i32_0 = arith.constant 0 : i32
    %c0_i32_1 = arith.constant 0 : i32
    return %c0_i32, %c0_i32_0 : i32, i32
  }
  func.func @transform_4(%arg0: i32) -> (i32, i32) {
    %c0_i32 = arith.constant 0 : i32
    %c0_i32_0 = arith.constant 0 : i32
    %c0_i32_1 = arith.constant 0 : i32
    return %c0_i32, %c0_i32_0 : i32, i32
  }
  func.func @transform_5(%arg0: i32) -> (i32, i32) {
    %c0_i32 = arith.constant 0 : i32
    %c0_i32_0 = arith.constant 0 : i32
    %c0_i32_1 = arith.constant 0 : i32
    return %c0_i32, %c0_i32_0 : i32, i32
  }
  func.func @transform_6(%arg0: i32) -> (i32, i32) {
    %c0_i32 = arith.constant 0 : i32
    %c0_i32_0 = arith.constant 0 : i32
    %c0_i32_1 = arith.constant 0 : i32
    return %c0_i32, %c0_i32_0 : i32, i32
  }
  func.func @transform_7(%arg0: i32) -> (i32, i32) {
    %c0_i32 = arith.constant 0 : i32
    %c0_i32_0 = arith.constant 0 : i32
    %c0_i32_1 = arith.constant 0 : i32
    return %c0_i32, %c0_i32_0 : i32, i32
  }
  func.func @transform_8(%arg0: i32) -> (i32, i32) {
    %c0_i32 = arith.constant 0 : i32
    %c0_i32_0 = arith.constant 0 : i32
    return %arg0, %c0_i32 : i32, i32
  }
}

</mosaic_0001>

<llo_original>
// kernel: tpu_custom_call.1
$region0: #{tpu_custom_call.1}
  #allocation0 [shape = 'u32[]', space=smem, size = 0x4, offset = 0x4, fixed_abs, tag = 'smem constant byte address 0x4 - core index']
  #allocation1 [shape = 'u32[144,128]{1,0:T(1,128)}', space=vmem, size = 0x12000, scoped, tag = 'internal scratch']
  %s0 = inlined_call_operand.vmem [shape: s32[32,1], index: 0, kind: input, shape index: {}]
  %s1 = inlined_call_operand.vmem [shape: bf16[32,8,16], index: 1, kind: input, shape index: {}]
  %s2 = inlined_call_operand.vmem [shape: bf16[80,128], index: 2, kind: input, shape index: {}]
  %s3 = inlined_call_operand.vmem [shape: f32[1,128], index: 3, kind: input, shape index: {}]
  %s4 = inlined_call_operand.vmem [shape: bf16[128,128], index: 4, kind: input, shape index: {}]
  %s5 = inlined_call_operand.vmem [shape: f32[1,128], index: 5, kind: input, shape index: {}]
  %s6 = inlined_call_operand.vmem [shape: bf16[128,128], index: 6, kind: input, shape index: {}]
  %s7 = inlined_call_operand.vmem [shape: f32[1,128], index: 7, kind: input, shape index: {}]
  %s8 = inlined_call_operand.hbm [shape: f32[32,128], index: 8, kind: output, shape index: {}]
  %s9 = sld [smem:[#allocation0]]
  $region42: #{tpu_custom_call.1} parent=0
    _
  %s11 = ssub.s32 1, %s9
  %s12 = scalar_select 0, %s11, %s9
  $region1: #{tpu_custom_call.1} parent=0
    #allocation2 [shape = 'u8[16384]{0}', space=vmem, size = 0x4000, scoped, tag = 'output window, operand 0, single buffered']
    #allocation3 [shape = 's32[1]{0}', space=sflag, size = 0x4, scoped, tag = 'scoped memory for tpu_custom_call.1']
    %13 = vsyncpa [#allocation3], 0
    // Predicated region
    $region2: #{tpu_custom_call.1} parent=1 // pred_check
      _
    $region3: #{tpu_custom_call.1} parent=1 // pred_check_branch
      %15 = sbr.rel (0) target = $region5
    $region4: #{tpu_custom_call.1} parent=1 // pred_region
      _
    $region5: #{tpu_custom_call.1} parent=1 // pred_fallthru
      _
    // Predicated region
    $region6: #{tpu_custom_call.1} parent=1 // pred_check
      _
    $region7: #{tpu_custom_call.1} parent=1 // pred_check_branch
      %17 = sbr.rel (0) target = $region9
    $region8: #{tpu_custom_call.1} parent=1 // pred_region
      _
    $region9: #{tpu_custom_call.1} parent=1 // pred_fallthru
      _
    // Predicated region
    $region10: #{tpu_custom_call.1} parent=1 // pred_check
      _
    $region11: #{tpu_custom_call.1} parent=1 // pred_check_branch
      %19 = sbr.rel (0) target = $region13
    $region12: #{tpu_custom_call.1} parent=1 // pred_region
      _
    $region13: #{tpu_custom_call.1} parent=1 // pred_fallthru
      _
    // Predicated region
    $region14: #{tpu_custom_call.1} parent=1 // pred_check
      _
    $region15: #{tpu_custom_call.1} parent=1 // pred_check_branch
      %21 = sbr.rel (0) target = $region17
    $region16: #{tpu_custom_call.1} parent=1 // pred_region
      _
    $region17: #{tpu_custom_call.1} parent=1 // pred_fallthru
      _
    // Predicated region
    $region18: #{tpu_custom_call.1} parent=1 // pred_check
      _
    $region19: #{tpu_custom_call.1} parent=1 // pred_check_branch
      %23 = sbr.rel (0) target = $region21
    $region20: #{tpu_custom_call.1} parent=1 // pred_region
      _
    $region21: #{tpu_custom_call.1} parent=1 // pred_fallthru
      _
    // Predicated region
    $region22: #{tpu_custom_call.1} parent=1 // pred_check
      _
    $region23: #{tpu_custom_call.1} parent=1 // pred_check_branch
      %25 = sbr.rel (0) target = $region25
    $region24: #{tpu_custom_call.1} parent=1 // pred_region
      _
    $region25: #{tpu_custom_call.1} parent=1 // pred_fallthru
      _
    // Predicated region
    $region26: #{tpu_custom_call.1} parent=1 // pred_check
      _
    $region27: #{tpu_custom_call.1} parent=1 // pred_check_branch
      %27 = sbr.rel (0) target = $region29
    $region28: #{tpu_custom_call.1} parent=1 // pred_region
      _
    $region29: #{tpu_custom_call.1} parent=1 // pred_fallthru
      _
    // Predicated region
    $region30: #{tpu_custom_call.1} parent=1 // pred_check
      _
    $region31: #{tpu_custom_call.1} parent=1 // pred_check_branch
      %29 = sbr.rel (0) target = $region33
    $region32: #{tpu_custom_call.1} parent=1 // pred_region
      _
    $region33: #{tpu_custom_call.1} parent=1 // pred_fallthru
      _
    %v31 = vld [vmem:[%s1] sm:$0xf]
    %v32 = vld [vmem:[%s1 + $0x4] sm:$0xf]
    %v33 = vld [vmem:[%s1 + $0x8] sm:$0xf]
    %v34 = vld [vmem:[%s1 + $0xc] sm:$0xf]
    %v35 = vld [vmem:[%s1 + $0x10] sm:$0xf]
    %v36 = vld [vmem:[%s1 + $0x14] sm:$0xf]
    %v37 = vld [vmem:[%s1 + $0x18] sm:$0xf]
    %v38 = vld [vmem:[%s1 + $0x1c] sm:$0xf]
    %v39 = vld [vmem:[%s1 + $0x20] sm:$0xf]
    %v40 = vld [vmem:[%s1 + $0x24] sm:$0xf]
    %v41 = vld [vmem:[%s1 + $0x28] sm:$0xf]
    %v42 = vld [vmem:[%s1 + $0x2c] sm:$0xf]
    %v43 = vld [vmem:[%s1 + $0x30] sm:$0xf]
    %v44 = vld [vmem:[%s1 + $0x34] sm:$0xf]
    %v45 = vld [vmem:[%s1 + $0x38] sm:$0xf]
    %v46 = vld [vmem:[%s1 + $0x3c] sm:$0xf]
    %v47 = vld [vmem:[%s1 + $0x40] sm:$0xf]
    %v48 = vld [vmem:[%s1 + $0x44] sm:$0xf]
    %v49 = vld [vmem:[%s1 + $0x48] sm:$0xf]
    %v50 = vld [vmem:[%s1 + $0x4c] sm:$0xf]
    %v51 = vld [vmem:[%s1 + $0x50] sm:$0xf]
    %v52 = vld [vmem:[%s1 + $0x54] sm:$0xf]
    %v53 = vld [vmem:[%s1 + $0x58] sm:$0xf]
    %v54 = vld [vmem:[%s1 + $0x5c] sm:$0xf]
    %v55 = vld [vmem:[%s1 + $0x60] sm:$0xf]
    %v56 = vld [vmem:[%s1 + $0x64] sm:$0xf]
    %v57 = vld [vmem:[%s1 + $0x68] sm:$0xf]
    %v58 = vld [vmem:[%s1 + $0x6c] sm:$0xf]
    %v59 = vld [vmem:[%s1 + $0x70] sm:$0xf]
    %v60 = vld [vmem:[%s1 + $0x74] sm:$0xf]
    %v61 = vld [vmem:[%s1 + $0x78] sm:$0xf]
    %v62 = vld [vmem:[%s1 + $0x7c] sm:$0xf]
    %v95 = vunpack.c.l.b16 %v31
    %v96 = vunpack.c.l.b16 %v32
    %v97 = vunpack.c.l.b16 %v33
    %v98 = vunpack.c.l.b16 %v34
    %v99 = vunpack.c.l.b16 %v35
    %v100 = vunpack.c.l.b16 %v36
    %v101 = vunpack.c.l.b16 %v37
    %v102 = vunpack.c.l.b16 %v38
    %v103 = vunpack.c.l.b16 %v39
    %v104 = vunpack.c.l.b16 %v40
    %v105 = vunpack.c.l.b16 %v41
    %v106 = vunpack.c.l.b16 %v42
    %v107 = vunpack.c.l.b16 %v43
    %v108 = vunpack.c.l.b16 %v44
    %v109 = vunpack.c.l.b16 %v45
    %v110 = vunpack.c.l.b16 %v46
    %v111 = vunpack.c.l.b16 %v47
    %v112 = vunpack.c.l.b16 %v48
    %v113 = vunpack.c.l.b16 %v49
    %v114 = vunpack.c.l.b16 %v50
    %v115 = vunpack.c.l.b16 %v51
    %v116 = vunpack.c.l.b16 %v52
    %v117 = vunpack.c.l.b16 %v53
    %v118 = vunpack.c.l.b16 %v54
    %v119 = vunpack.c.l.b16 %v55
    %v120 = vunpack.c.l.b16 %v56
    %v121 = vunpack.c.l.b16 %v57
    %v122 = vunpack.c.l.b16 %v58
    %v123 = vunpack.c.l.b16 %v59
    %v124 = vunpack.c.l.b16 %v60
    %v125 = vunpack.c.l.b16 %v61
    %v126 = vunpack.c.l.b16 %v62
    %v127 = vpack.c.b16 %v95, %v95
    %v128 = vpack.c.b16 %v96, %v96
    %v129 = vpack.c.b16 %v97, %v97
    %v130 = vpack.c.b16 %v98, %v98
    %v131 = vpack.c.b16 %v99, %v99
    %v132 = vpack.c.b16 %v100, %v100
    %v133 = vpack.c.b16 %v101, %v101
    %v134 = vpack.c.b16 %v102, %v102
    %v135 = vpack.c.b16 %v103, %v103
    %v136 = vpack.c.b16 %v104, %v104
    %v137 = vpack.c.b16 %v105, %v105
    %v138 = vpack.c.b16 %v106, %v106
    %v139 = vpack.c.b16 %v107, %v107
    %v140 = vpack.c.b16 %v108, %v108
    %v141 = vpack.c.b16 %v109, %v109
    %v142 = vpack.c.b16 %v110, %v110
    %v143 = vpack.c.b16 %v111, %v111
    %v144 = vpack.c.b16 %v112, %v112
    %v145 = vpack.c.b16 %v113, %v113
    %v146 = vpack.c.b16 %v114, %v114
    %v147 = vpack.c.b16 %v115, %v115
    %v148 = vpack.c.b16 %v116, %v116
    %v149 = vpack.c.b16 %v117, %v117
    %v150 = vpack.c.b16 %v118, %v118
    %v151 = vpack.c.b16 %v119, %v119
    %v152 = vpack.c.b16 %v120, %v120
    %v153 = vpack.c.b16 %v121, %v121
    %v154 = vpack.c.b16 %v122, %v122
    %v155 = vpack.c.b16 %v123, %v123
    %v156 = vpack.c.b16 %v124, %v124
    %v157 = vpack.c.b16 %v125, %v125
    %v158 = vpack.c.b16 %v126, %v126
    %v159 = vrot.slane %v127, 7
    %v160 = vrot.slane %v128, 7
    %v161 = vrot.slane %v129, 7
    %v162 = vrot.slane %v130, 7
    %v163 = vrot.slane %v131, 7
    %v164 = vrot.slane %v132, 7
    %v165 = vrot.slane %v133, 7
    %v166 = vrot.slane %v134, 7
    %v167 = vrot.slane %v135, 7
    %v168 = vrot.slane %v136, 7
    %v169 = vrot.slane %v137, 7
    %v170 = vrot.slane %v138, 7
    %v171 = vrot.slane %v139, 7
    %v172 = vrot.slane %v140, 7
    %v173 = vrot.slane %v141, 7
    %v174 = vrot.slane %v142, 7
    %v175 = vrot.slane %v143, 7
    %v176 = vrot.slane %v144, 7
    %v177 = vrot.slane %v145, 7
    %v178 = vrot.slane %v146, 7
    %v179 = vrot.slane %v147, 7
    %v180 = vrot.slane %v148, 7
    %v181 = vrot.slane %v149, 7
    %v182 = vrot.slane %v150, 7
    %v183 = vrot.slane %v151, 7
    %v184 = vrot.slane %v152, 7
    %v185 = vrot.slane %v153, 7
    %v186 = vrot.slane %v154, 7
    %v187 = vrot.slane %v155, 7
    %v188 = vrot.slane %v156, 7
    %v189 = vrot.slane %v157, 7
    %v190 = vrot.slane %v158, 7
    %vm191 = vcmask 1040384
    %v194 = vsel %vm191, 0, %v159
    %v196 = vsel %vm191, 0, %v160
    %v198 = vsel %vm191, 0, %v161
    %v200 = vsel %vm191, 0, %v162
    %v202 = vsel %vm191, 0, %v163
    %v204 = vsel %vm191, 0, %v164
    %v206 = vsel %vm191, 0, %v165
    %v208 = vsel %vm191, 0, %v166
    %v210 = vsel %vm191, 0, %v167
    %v212 = vsel %vm191, 0, %v168
    %v214 = vsel %vm191, 0, %v169
    %v216 = vsel %vm191, 0, %v170
    %v218 = vsel %vm191, 0, %v171
    %v220 = vsel %vm191, 0, %v172
    %v222 = vsel %vm191, 0, %v173
    %v224 = vsel %vm191, 0, %v174
    %v226 = vsel %vm191, 0, %v175
    %v228 = vsel %vm191, 0, %v176
    %v230 = vsel %vm191, 0, %v177
    %v232 = vsel %vm191, 0, %v178
    %v234 = vsel %vm191, 0, %v179
    %v236 = vsel %vm191, 0, %v180
    %v238 = vsel %vm191, 0, %v181
    %v240 = vsel %vm191, 0, %v182
    %v242 = vsel %vm191, 0, %v183
    %v244 = vsel %vm191, 0, %v184
    %v246 = vsel %vm191, 0, %v185
    %v248 = vsel %vm191, 0, %v186
    %v250 = vsel %vm191, 0, %v187
    %v252 = vsel %vm191, 0, %v188
    %v254 = vsel %vm191, 0, %v189
    %v256 = vsel %vm191, 0, %v190
    %vm257 = vcmask 1044480
    %v258 = vsel %vm257, %v194, 0
    %v259 = vsel %vm257, %v196, 0
    %v260 = vsel %vm257, %v198, 0
    %v261 = vsel %vm257, %v200, 0
    %v262 = vsel %vm257, %v202, 0
    %v263 = vsel %vm257, %v204, 0
    %v264 = vsel %vm257, %v206, 0
    %v265 = vsel %vm257, %v208, 0
    %v266 = vsel %vm257, %v210, 0
    %v267 = vsel %vm257, %v212, 0
    %v268 = vsel %vm257, %v214, 0
    %v269 = vsel %vm257, %v216, 0
    %v270 = vsel %vm257, %v218, 0
    %v271 = vsel %vm257, %v220, 0
    %v272 = vsel %vm257, %v222, 0
    %v273 = vsel %vm257, %v224, 0
    %v274 = vsel %vm257, %v226, 0
    %v275 = vsel %vm257, %v228, 0
    %v276 = vsel %vm257, %v230, 0
    %v277 = vsel %vm257, %v232, 0
    %v278 = vsel %vm257, %v234, 0
    %v279 = vsel %vm257, %v236, 0
    %v280 = vsel %vm257, %v238, 0
    %v281 = vsel %vm257, %v240, 0
    %v282 = vsel %vm257, %v242, 0
    %v283 = vsel %vm257, %v244, 0
    %v284 = vsel %vm257, %v246, 0
    %v285 = vsel %vm257, %v248, 0
    %v286 = vsel %vm257, %v250, 0
    %v287 = vsel %vm257, %v252, 0
    %v288 = vsel %vm257, %v254, 0
    %v289 = vsel %vm257, %v256, 0
    %v290 = vshrl.u32 %v258, 16
    %v292 = vshll.u32 %v258, 16
    %v294 = vrot.slane %v292, 1
    %v295 = vor.u32 %v290, %v294
    %v296 = vshrl.u32 %v259, 16
    %v298 = vshll.u32 %v259, 16
    %v300 = vrot.slane %v298, 1
    %v301 = vor.u32 %v296, %v300
    %v302 = vshrl.u32 %v260, 16
    %v304 = vshll.u32 %v260, 16
    %v306 = vrot.slane %v304, 1
    %v307 = vor.u32 %v302, %v306
    %v308 = vshrl.u32 %v261, 16
    %v310 = vshll.u32 %v261, 16
    %v312 = vrot.slane %v310, 1
    %v313 = vor.u32 %v308, %v312
    %v314 = vshrl.u32 %v262, 16
    %v316 = vshll.u32 %v262, 16
    %v318 = vrot.slane %v316, 1
    %v319 = vor.u32 %v314, %v318
    %v320 = vshrl.u32 %v263, 16
    %v322 = vshll.u32 %v263, 16
    %v324 = vrot.slane %v322, 1
    %v325 = vor.u32 %v320, %v324
    %v326 = vshrl.u32 %v264, 16
    %v328 = vshll.u32 %v264, 16
    %v330 = vrot.slane %v328, 1
    %v331 = vor.u32 %v326, %v330
    %v332 = vshrl.u32 %v265, 16
    %v334 = vshll.u32 %v265, 16
    %v336 = vrot.slane %v334, 1
    %v337 = vor.u32 %v332, %v336
    %v338 = vshrl.u32 %v266, 16
    %v340 = vshll.u32 %v266, 16
    %v342 = vrot.slane %v340, 1
    %v343 = vor.u32 %v338, %v342
    %v344 = vshrl.u32 %v267, 16
    %v346 = vshll.u32 %v267, 16
    %v348 = vrot.slane %v346, 1
    %v349 = vor.u32 %v344, %v348
    %v350 = vshrl.u32 %v268, 16
    %v352 = vshll.u32 %v268, 16
    %v354 = vrot.slane %v352, 1
    %v355 = vor.u32 %v350, %v354
    %v356 = vshrl.u32 %v269, 16
    %v358 = vshll.u32 %v269, 16
    %v360 = vrot.slane %v358, 1
    %v361 = vor.u32 %v356, %v360
    %v362 = vshrl.u32 %v270, 16
    %v364 = vshll.u32 %v270, 16
    %v366 = vrot.slane %v364, 1
    %v367 = vor.u32 %v362, %v366
    %v368 = vshrl.u32 %v271, 16
    %v370 = vshll.u32 %v271, 16
    %v372 = vrot.slane %v370, 1
    %v373 = vor.u32 %v368, %v372
    %v374 = vshrl.u32 %v272, 16
    %v376 = vshll.u32 %v272, 16
    %v378 = vrot.slane %v376, 1
    %v379 = vor.u32 %v374, %v378
    %v380 = vshrl.u32 %v273, 16
    %v382 = vshll.u32 %v273, 16
    %v384 = vrot.slane %v382, 1
    %v385 = vor.u32 %v380, %v384
    %v386 = vshrl.u32 %v274, 16
    %v388 = vshll.u32 %v274, 16
    %v390 = vrot.slane %v388, 1
    %v391 = vor.u32 %v386, %v390
    %v392 = vshrl.u32 %v275, 16
    %v394 = vshll.u32 %v275, 16
    %v396 = vrot.slane %v394, 1
    %v397 = vor.u32 %v392, %v396
    %v398 = vshrl.u32 %v276, 16
    %v400 = vshll.u32 %v276, 16
    %v402 = vrot.slane %v400, 1
    %v403 = vor.u32 %v398, %v402
    %v404 = vshrl.u32 %v277, 16
    %v406 = vshll.u32 %v277, 16
    %v408 = vrot.slane %v406, 1
    %v409 = vor.u32 %v404, %v408
    %v410 = vshrl.u32 %v278, 16
    %v412 = vshll.u32 %v278, 16
    %v414 = vrot.slane %v412, 1
    %v415 = vor.u32 %v410, %v414
    %v416 = vshrl.u32 %v279, 16
    %v418 = vshll.u32 %v279, 16
    %v420 = vrot.slane %v418, 1
    %v421 = vor.u32 %v416, %v420
    %v422 = vshrl.u32 %v280, 16
    %v424 = vshll.u32 %v280, 16
    %v426 = vrot.slane %v424, 1
    %v427 = vor.u32 %v422, %v426
    %v428 = vshrl.u32 %v281, 16
    %v430 = vshll.u32 %v281, 16
    %v432 = vrot.slane %v430, 1
    %v433 = vor.u32 %v428, %v432
    %v434 = vshrl.u32 %v282, 16
    %v436 = vshll.u32 %v282, 16
    %v438 = vrot.slane %v436, 1
    %v439 = vor.u32 %v434, %v438
    %v440 = vshrl.u32 %v283, 16
    %v442 = vshll.u32 %v283, 16
    %v444 = vrot.slane %v442, 1
    %v445 = vor.u32 %v440, %v444
    %v446 = vshrl.u32 %v284, 16
    %v448 = vshll.u32 %v284, 16
    %v450 = vrot.slane %v448, 1
    %v451 = vor.u32 %v446, %v450
    %v452 = vshrl.u32 %v285, 16
    %v454 = vshll.u32 %v285, 16
    %v456 = vrot.slane %v454, 1
    %v457 = vor.u32 %v452, %v456
    %v458 = vshrl.u32 %v286, 16
    %v460 = vshll.u32 %v286, 16
    %v462 = vrot.slane %v460, 1
    %v463 = vor.u32 %v458, %v462
    %v464 = vshrl.u32 %v287, 16
    %v466 = vshll.u32 %v287, 16
    %v468 = vrot.slane %v466, 1
    %v469 = vor.u32 %v464, %v468
    %v470 = vshrl.u32 %v288, 16
    %v472 = vshll.u32 %v288, 16
    %v474 = vrot.slane %v472, 1
    %v475 = vor.u32 %v470, %v474
    %v476 = vshrl.u32 %v289, 16
    %v478 = vshll.u32 %v289, 16
    %v480 = vrot.slane %v478, 1
    %v481 = vor.u32 %v476, %v480
    %482 = vrot.lane.b32.xlu0 %v295, 16
    %v483 = vpop.permute.xlu0 %482
    %484 = vrot.lane.b32.xlu0 %v301, 16
    %v485 = vpop.permute.xlu0 %484
    %486 = vrot.lane.b32.xlu0 %v307, 16
    %v487 = vpop.permute.xlu0 %486
    %488 = vrot.lane.b32.xlu0 %v313, 16
    %v489 = vpop.permute.xlu0 %488
    %490 = vrot.lane.b32.xlu0 %v319, 16
    %v491 = vpop.permute.xlu0 %490
    %492 = vrot.lane.b32.xlu0 %v325, 16
    %v493 = vpop.permute.xlu0 %492
    %494 = vrot.lane.b32.xlu0 %v331, 16
    %v495 = vpop.permute.xlu0 %494
    %496 = vrot.lane.b32.xlu0 %v337, 16
    %v497 = vpop.permute.xlu0 %496
    %498 = vrot.lane.b32.xlu0 %v343, 16
    %v499 = vpop.permute.xlu0 %498
    %500 = vrot.lane.b32.xlu0 %v349, 16
    %v501 = vpop.permute.xlu0 %500
    %502 = vrot.lane.b32.xlu0 %v355, 16
    %v503 = vpop.permute.xlu0 %502
    %504 = vrot.lane.b32.xlu0 %v361, 16
    %v505 = vpop.permute.xlu0 %504
    %506 = vrot.lane.b32.xlu0 %v367, 16
    %v507 = vpop.permute.xlu0 %506
    %508 = vrot.lane.b32.xlu0 %v373, 16
    %v509 = vpop.permute.xlu0 %508
    %510 = vrot.lane.b32.xlu0 %v379, 16
    %v511 = vpop.permute.xlu0 %510
    %512 = vrot.lane.b32.xlu0 %v385, 16
    %v513 = vpop.permute.xlu0 %512
    %514 = vrot.lane.b32.xlu0 %v391, 16
    %v515 = vpop.permute.xlu0 %514
    %516 = vrot.lane.b32.xlu0 %v397, 16
    %v517 = vpop.permute.xlu0 %516
    %518 = vrot.lane.b32.xlu0 %v403, 16
    %v519 = vpop.permute.xlu0 %518
    %520 = vrot.lane.b32.xlu0 %v409, 16
    %v521 = vpop.permute.xlu0 %520
    %522 = vrot.lane.b32.xlu0 %v415, 16
    %v523 = vpop.permute.xlu0 %522
    %524 = vrot.lane.b32.xlu0 %v421, 16
    %v525 = vpop.permute.xlu0 %524
    %526 = vrot.lane.b32.xlu0 %v427, 16
    %v527 = vpop.permute.xlu0 %526
    %528 = vrot.lane.b32.xlu0 %v433, 16
    %v529 = vpop.permute.xlu0 %528
    %530 = vrot.lane.b32.xlu0 %v439, 16
    %v531 = vpop.permute.xlu0 %530
    %532 = vrot.lane.b32.xlu0 %v445, 16
    %v533 = vpop.permute.xlu0 %532
    %534 = vrot.lane.b32.xlu0 %v451, 16
    %v535 = vpop.permute.xlu0 %534
    %536 = vrot.lane.b32.xlu0 %v457, 16
    %v537 = vpop.permute.xlu0 %536
    %538 = vrot.lane.b32.xlu0 %v463, 16
    %v539 = vpop.permute.xlu0 %538
    %540 = vrot.lane.b32.xlu0 %v469, 16
    %v541 = vpop.permute.xlu0 %540
    %542 = vrot.lane.b32.xlu0 %v475, 16
    %v543 = vpop.permute.xlu0 %542
    %544 = vrot.lane.b32.xlu0 %v481, 16
    %v545 = vpop.permute.xlu0 %544
    %v578 = vrot.slane %v258, 1
    %v579 = vrot.slane %v259, 1
    %v580 = vrot.slane %v260, 1
    %v581 = vrot.slane %v261, 1
    %v582 = vrot.slane %v262, 1
    %v583 = vrot.slane %v263, 1
    %v584 = vrot.slane %v264, 1
    %v585 = vrot.slane %v265, 1
    %v586 = vrot.slane %v266, 1
    %v587 = vrot.slane %v267, 1
    %v588 = vrot.slane %v268, 1
    %v589 = vrot.slane %v269, 1
    %v590 = vrot.slane %v270, 1
    %v591 = vrot.slane %v271, 1
    %v592 = vrot.slane %v272, 1
    %v593 = vrot.slane %v273, 1
    %v594 = vrot.slane %v274, 1
    %v595 = vrot.slane %v275, 1
    %v596 = vrot.slane %v276, 1
    %v597 = vrot.slane %v277, 1
    %v598 = vrot.slane %v278, 1
    %v599 = vrot.slane %v279, 1
    %v600 = vrot.slane %v280, 1
    %v601 = vrot.slane %v281, 1
    %v602 = vrot.slane %v282, 1
    %v603 = vrot.slane %v283, 1
    %v604 = vrot.slane %v284, 1
    %v605 = vrot.slane %v285, 1
    %v606 = vrot.slane %v286, 1
    %v607 = vrot.slane %v287, 1
    %v608 = vrot.slane %v288, 1
    %v609 = vrot.slane %v289, 1
    %610 = vrot.lane.b32.xlu0 %v578, 32
    %v611 = vpop.permute.xlu0 %610
    %612 = vrot.lane.b32.xlu0 %v579, 32
    %v613 = vpop.permute.xlu0 %612
    %614 = vrot.lane.b32.xlu0 %v580, 32
    %v615 = vpop.permute.xlu0 %614
    %616 = vrot.lane.b32.xlu0 %v581, 32
    %v617 = vpop.permute.xlu0 %616
    %618 = vrot.lane.b32.xlu0 %v582, 32
    %v619 = vpop.permute.xlu0 %618
    %620 = vrot.lane.b32.xlu0 %v583, 32
    %v621 = vpop.permute.xlu0 %620
    %622 = vrot.lane.b32.xlu0 %v584, 32
    %v623 = vpop.permute.xlu0 %622
    %624 = vrot.lane.b32.xlu0 %v585, 32
    %v625 = vpop.permute.xlu0 %624
    %626 = vrot.lane.b32.xlu0 %v586, 32
    %v627 = vpop.permute.xlu0 %626
    %628 = vrot.lane.b32.xlu0 %v587, 32
    %v629 = vpop.permute.xlu0 %628
    %630 = vrot.lane.b32.xlu0 %v588, 32
    %v631 = vpop.permute.xlu0 %630
    %632 = vrot.lane.b32.xlu0 %v589, 32
    %v633 = vpop.permute.xlu0 %632
    %634 = vrot.lane.b32.xlu0 %v590, 32
    %v635 = vpop.permute.xlu0 %634
    %636 = vrot.lane.b32.xlu0 %v591, 32
    %v637 = vpop.permute.xlu0 %636
    %638 = vrot.lane.b32.xlu0 %v592, 32
    %v639 = vpop.permute.xlu0 %638
    %640 = vrot.lane.b32.xlu0 %v593, 32
    %v641 = vpop.permute.xlu0 %640
    %642 = vrot.lane.b32.xlu0 %v594, 32
    %v643 = vpop.permute.xlu0 %642
    %644 = vrot.lane.b32.xlu0 %v595, 32
    %v645 = vpop.permute.xlu0 %644
    %646 = vrot.lane.b32.xlu0 %v596, 32
    %v647 = vpop.permute.xlu0 %646
    %648 = vrot.lane.b32.xlu0 %v597, 32
    %v649 = vpop.permute.xlu0 %648
    %650 = vrot.lane.b32.xlu0 %v598, 32
    %v651 = vpop.permute.xlu0 %650
    %652 = vrot.lane.b32.xlu0 %v599, 32
    %v653 = vpop.permute.xlu0 %652
    %654 = vrot.lane.b32.xlu0 %v600, 32
    %v655 = vpop.permute.xlu0 %654
    %656 = vrot.lane.b32.xlu0 %v601, 32
    %v657 = vpop.permute.xlu0 %656
    %658 = vrot.lane.b32.xlu0 %v602, 32
    %v659 = vpop.permute.xlu0 %658
    %660 = vrot.lane.b32.xlu0 %v603, 32
    %v661 = vpop.permute.xlu0 %660
    %662 = vrot.lane.b32.xlu0 %v604, 32
    %v663 = vpop.permute.xlu0 %662
    %664 = vrot.lane.b32.xlu0 %v605, 32
    %v665 = vpop.permute.xlu0 %664
    %666 = vrot.lane.b32.xlu0 %v606, 32
    %v667 = vpop.permute.xlu0 %666
    %668 = vrot.lane.b32.xlu0 %v607, 32
    %v669 = vpop.permute.xlu0 %668
    %670 = vrot.lane.b32.xlu0 %v608, 32
    %v671 = vpop.permute.xlu0 %670
    %672 = vrot.lane.b32.xlu0 %v609, 32
    %v673 = vpop.permute.xlu0 %672
    %v674 = vrot.slane %v290, 1
    %v675 = vrot.slane %v292, 2
    %v676 = vor.u32 %v674, %v675
    %v677 = vrot.slane %v296, 1
    %v678 = vrot.slane %v298, 2
    %v679 = vor.u32 %v677, %v678
    %v680 = vrot.slane %v302, 1
    %v681 = vrot.slane %v304, 2
    %v682 = vor.u32 %v680, %v681
    %v683 = vrot.slane %v308, 1
    %v684 = vrot.slane %v310, 2
    %v685 = vor.u32 %v683, %v684
    %v686 = vrot.slane %v314, 1
    %v687 = vrot.slane %v316, 2
    %v688 = vor.u32 %v686, %v687
    %v689 = vrot.slane %v320, 1
    %v690 = vrot.slane %v322, 2
    %v691 = vor.u32 %v689, %v690
    %v692 = vrot.slane %v326, 1
    %v693 = vrot.slane %v328, 2
    %v694 = vor.u32 %v692, %v693
    %v695 = vrot.slane %v332, 1
    %v696 = vrot.slane %v334, 2
    %v697 = vor.u32 %v695, %v696
    %v698 = vrot.slane %v338, 1
    %v699 = vrot.slane %v340, 2
    %v700 = vor.u32 %v698, %v699
    %v701 = vrot.slane %v344, 1
    %v702 = vrot.slane %v346, 2
    %v703 = vor.u32 %v701, %v702
    %v704 = vrot.slane %v350, 1
    %v705 = vrot.slane %v352, 2
    %v706 = vor.u32 %v704, %v705
    %v707 = vrot.slane %v356, 1
    %v708 = vrot.slane %v358, 2
    %v709 = vor.u32 %v707, %v708
    %v710 = vrot.slane %v362, 1
    %v711 = vrot.slane %v364, 2
    %v712 = vor.u32 %v710, %v711
    %v713 = vrot.slane %v368, 1
    %v714 = vrot.slane %v370, 2
    %v715 = vor.u32 %v713, %v714
    %v716 = vrot.slane %v374, 1
    %v717 = vrot.slane %v376, 2
    %v718 = vor.u32 %v716, %v717
    %v719 = vrot.slane %v380, 1
    %v720 = vrot.slane %v382, 2
    %v721 = vor.u32 %v719, %v720
    %v722 = vrot.slane %v386, 1
    %v723 = vrot.slane %v388, 2
    %v724 = vor.u32 %v722, %v723
    %v725 = vrot.slane %v392, 1
    %v726 = vrot.slane %v394, 2
    %v727 = vor.u32 %v725, %v726
    %v728 = vrot.slane %v398, 1
    %v729 = vrot.slane %v400, 2
    %v730 = vor.u32 %v728, %v729
    %v731 = vrot.slane %v404, 1
    %v732 = vrot.slane %v406, 2
    %v733 = vor.u32 %v731, %v732
    %v734 = vrot.slane %v410, 1
    %v735 = vrot.slane %v412, 2
    %v736 = vor.u32 %v734, %v735
    %v737 = vrot.slane %v416, 1
    %v738 = vrot.slane %v418, 2
    %v739 = vor.u32 %v737, %v738
    %v740 = vrot.slane %v422, 1
    %v741 = vrot.slane %v424, 2
    %v742 = vor.u32 %v740, %v741
    %v743 = vrot.slane %v428, 1
    %v744 = vrot.slane %v430, 2
    %v745 = vor.u32 %v743, %v744
    %v746 = vrot.slane %v434, 1
    %v747 = vrot.slane %v436, 2
    %v748 = vor.u32 %v746, %v747
    %v749 = vrot.slane %v440, 1
    %v750 = vrot.slane %v442, 2
    %v751 = vor.u32 %v749, %v750
    %v752 = vrot.slane %v446, 1
    %v753 = vrot.slane %v448, 2
    %v754 = vor.u32 %v752, %v753
    %v755 = vrot.slane %v452, 1
    %v756 = vrot.slane %v454, 2
    %v757 = vor.u32 %v755, %v756
    %v758 = vrot.slane %v458, 1
    %v759 = vrot.slane %v460, 2
    %v760 = vor.u32 %v758, %v759
    %v761 = vrot.slane %v464, 1
    %v762 = vrot.slane %v466, 2
    %v763 = vor.u32 %v761, %v762
    %v764 = vrot.slane %v470, 1
    %v765 = vrot.slane %v472, 2
    %v766 = vor.u32 %v764, %v765
    %v767 = vrot.slane %v476, 1
    %v768 = vrot.slane %v478, 2
    %v769 = vor.u32 %v767, %v768
    %770 = vrot.lane.b32.xlu0 %v676, 48
    %v771 = vpop.permute.xlu0 %770
    %772 = vrot.lane.b32.xlu0 %v679, 48
    %v773 = vpop.permute.xlu0 %772
    %774 = vrot.lane.b32.xlu0 %v682, 48
    %v775 = vpop.permute.xlu0 %774
    %776 = vrot.lane.b32.xlu0 %v685, 48
    %v777 = vpop.permute.xlu0 %776
    %778 = vrot.lane.b32.xlu0 %v688, 48
    %v779 = vpop.permute.xlu0 %778
    %780 = vrot.lane.b32.xlu0 %v691, 48
    %v781 = vpop.permute.xlu0 %780
    %782 = vrot.lane.b32.xlu0 %v694, 48
    %v783 = vpop.permute.xlu0 %782
    %784 = vrot.lane.b32.xlu0 %v697, 48
    %v785 = vpop.permute.xlu0 %784
    %786 = vrot.lane.b32.xlu0 %v700, 48
    %v787 = vpop.permute.xlu0 %786
    %788 = vrot.lane.b32.xlu0 %v703, 48
    %v789 = vpop.permute.xlu0 %788
    %790 = vrot.lane.b32.xlu0 %v706, 48
    %v791 = vpop.permute.xlu0 %790
    %792 = vrot.lane.b32.xlu0 %v709, 48
    %v793 = vpop.permute.xlu0 %792
    %794 = vrot.lane.b32.xlu0 %v712, 48
    %v795 = vpop.permute.xlu0 %794
    %796 = vrot.lane.b32.xlu0 %v715, 48
    %v797 = vpop.permute.xlu0 %796
    %798 = vrot.lane.b32.xlu0 %v718, 48
    %v799 = vpop.permute.xlu0 %798
    %800 = vrot.lane.b32.xlu0 %v721, 48
    %v801 = vpop.permute.xlu0 %800
    %802 = vrot.lane.b32.xlu0 %v724, 48
    %v803 = vpop.permute.xlu0 %802
    %804 = vrot.lane.b32.xlu0 %v727, 48
    %v805 = vpop.permute.xlu0 %804
    %806 = vrot.lane.b32.xlu0 %v730, 48
    %v807 = vpop.permute.xlu0 %806
    %808 = vrot.lane.b32.xlu0 %v733, 48
    %v809 = vpop.permute.xlu0 %808
    %810 = vrot.lane.b32.xlu0 %v736, 48
    %v811 = vpop.permute.xlu0 %810
    %812 = vrot.lane.b32.xlu0 %v739, 48
    %v813 = vpop.permute.xlu0 %812
    %814 = vrot.lane.b32.xlu0 %v742, 48
    %v815 = vpop.permute.xlu0 %814
    %816 = vrot.lane.b32.xlu0 %v745, 48
    %v817 = vpop.permute.xlu0 %816
    %818 = vrot.lane.b32.xlu0 %v748, 48
    %v819 = vpop.permute.xlu0 %818
    %820 = vrot.lane.b32.xlu0 %v751, 48
    %v821 = vpop.permute.xlu0 %820
    %822 = vrot.lane.b32.xlu0 %v754, 48
    %v823 = vpop.permute.xlu0 %822
    %824 = vrot.lane.b32.xlu0 %v757, 48
    %v825 = vpop.permute.xlu0 %824
    %826 = vrot.lane.b32.xlu0 %v760, 48
    %v827 = vpop.permute.xlu0 %826
    %828 = vrot.lane.b32.xlu0 %v763, 48
    %v829 = vpop.permute.xlu0 %828
    %830 = vrot.lane.b32.xlu0 %v766, 48
    %v831 = vpop.permute.xlu0 %830
    %832 = vrot.lane.b32.xlu0 %v769, 48
    %v833 = vpop.permute.xlu0 %832
    %v834 = vrot.slane %v258, 2
    %v835 = vrot.slane %v259, 2
    %v836 = vrot.slane %v260, 2
    %v837 = vrot.slane %v261, 2
    %v838 = vrot.slane %v262, 2
    %v839 = vrot.slane %v263, 2
    %v840 = vrot.slane %v264, 2
    %v841 = vrot.slane %v265, 2
    %v842 = vrot.slane %v266, 2
    %v843 = vrot.slane %v267, 2
    %v844 = vrot.slane %v268, 2
    %v845 = vrot.slane %v269, 2
    %v846 = vrot.slane %v270, 2
    %v847 = vrot.slane %v271, 2
    %v848 = vrot.slane %v272, 2
    %v849 = vrot.slane %v273, 2
    %v850 = vrot.slane %v274, 2
    %v851 = vrot.slane %v275, 2
    %v852 = vrot.slane %v276, 2
    %v853 = vrot.slane %v277, 2
    %v854 = vrot.slane %v278, 2
    %v855 = vrot.slane %v279, 2
    %v856 = vrot.slane %v280, 2
    %v857 = vrot.slane %v281, 2
    %v858 = vrot.slane %v282, 2
    %v859 = vrot.slane %v283, 2
    %v860 = vrot.slane %v284, 2
    %v861 = vrot.slane %v285, 2
    %v862 = vrot.slane %v286, 2
    %v863 = vrot.slane %v287, 2
    %v864 = vrot.slane %v288, 2
    %v865 = vrot.slane %v289, 2
    %866 = vrot.lane.b32.xlu0 %v834, 64
    %v867 = vpop.permute.xlu0 %866
    %868 = vrot.lane.b32.xlu0 %v835, 64
    %v869 = vpop.permute.xlu0 %868
    %870 = vrot.lane.b32.xlu0 %v836, 64
    %v871 = vpop.permute.xlu0 %870
    %872 = vrot.lane.b32.xlu0 %v837, 64
    %v873 = vpop.permute.xlu0 %872
    %874 = vrot.lane.b32.xlu0 %v838, 64
    %v875 = vpop.permute.xlu0 %874
    %876 = vrot.lane.b32.xlu0 %v839, 64
    %v877 = vpop.permute.xlu0 %876
    %878 = vrot.lane.b32.xlu0 %v840, 64
    %v879 = vpop.permute.xlu0 %878
    %880 = vrot.lane.b32.xlu0 %v841, 64
    %v881 = vpop.permute.xlu0 %880
    %882 = vrot.lane.b32.xlu0 %v842, 64
    %v883 = vpop.permute.xlu0 %882
    %884 = vrot.lane.b32.xlu0 %v843, 64
    %v885 = vpop.permute.xlu0 %884
    %886 = vrot.lane.b32.xlu0 %v844, 64
    %v887 = vpop.permute.xlu0 %886
    %888 = vrot.lane.b32.xlu0 %v845, 64
    %v889 = vpop.permute.xlu0 %888
    %890 = vrot.lane.b32.xlu0 %v846, 64
    %v891 = vpop.permute.xlu0 %890
    %892 = vrot.lane.b32.xlu0 %v847, 64
    %v893 = vpop.permute.xlu0 %892
    %894 = vrot.lane.b32.xlu0 %v848, 64
    %v895 = vpop.permute.xlu0 %894
    %896 = vrot.lane.b32.xlu0 %v849, 64
    %v897 = vpop.permute.xlu0 %896
    %898 = vrot.lane.b32.xlu0 %v850, 64
    %v899 = vpop.permute.xlu0 %898
    %900 = vrot.lane.b32.xlu0 %v851, 64
    %v901 = vpop.permute.xlu0 %900
    %902 = vrot.lane.b32.xlu0 %v852, 64
    %v903 = vpop.permute.xlu0 %902
    %904 = vrot.lane.b32.xlu0 %v853, 64
    %v905 = vpop.permute.xlu0 %904
    %906 = vrot.lane.b32.xlu0 %v854, 64
    %v907 = vpop.permute.xlu0 %906
    %908 = vrot.lane.b32.xlu0 %v855, 64
    %v909 = vpop.permute.xlu0 %908
    %910 = vrot.lane.b32.xlu0 %v856, 64
    %v911 = vpop.permute.xlu0 %910
    %912 = vrot.lane.b32.xlu0 %v857, 64
    %v913 = vpop.permute.xlu0 %912
    %914 = vrot.lane.b32.xlu0 %v858, 64
    %v915 = vpop.permute.xlu0 %914
    %916 = vrot.lane.b32.xlu0 %v859, 64
    %v917 = vpop.permute.xlu0 %916
    %918 = vrot.lane.b32.xlu0 %v860, 64
    %v919 = vpop.permute.xlu0 %918
    %920 = vrot.lane.b32.xlu0 %v861, 64
    %v921 = vpop.permute.xlu0 %920
    %922 = vrot.lane.b32.xlu0 %v862, 64
    %v923 = vpop.permute.xlu0 %922
    %924 = vrot.lane.b32.xlu0 %v863, 64
    %v925 = vpop.permute.xlu0 %924
    %926 = vrot.lane.b32.xlu0 %v864, 64
    %v927 = vpop.permute.xlu0 %926
    %928 = vrot.lane.b32.xlu0 %v865, 64
    %v929 = vpop.permute.xlu0 %928
    %vm930 = vcmask 130048
    %v932 = vsel %vm930, %v258, %v483
    %v934 = vsel %vm930, %v259, %v485
    %v936 = vsel %vm930, %v260, %v487
    %v938 = vsel %vm930, %v261, %v489
    %v940 = vsel %vm930, %v262, %v491
    %v942 = vsel %vm930, %v263, %v493
    %v944 = vsel %vm930, %v264, %v495
    %v946 = vsel %vm930, %v265, %v497
    %v948 = vsel %vm930, %v266, %v499
    %v950 = vsel %vm930, %v267, %v501
    %v952 = vsel %vm930, %v268, %v503
    %v954 = vsel %vm930, %v269, %v505
    %v956 = vsel %vm930, %v270, %v507
    %v958 = vsel %vm930, %v271, %v509
    %v960 = vsel %vm930, %v272, %v511
    %v962 = vsel %vm930, %v273, %v513
    %v964 = vsel %vm930, %v274, %v515
    %v966 = vsel %vm930, %v275, %v517
    %v968 = vsel %vm930, %v276, %v519
    %v970 = vsel %vm930, %v277, %v521
    %v972 = vsel %vm930, %v278, %v523
    %v974 = vsel %vm930, %v279, %v525
    %v976 = vsel %vm930, %v280, %v527
    %v978 = vsel %vm930, %v281, %v529
    %v980 = vsel %vm930, %v282, %v531
    %v982 = vsel %vm930, %v283, %v533
    %v984 = vsel %vm930, %v284, %v535
    %v986 = vsel %vm930, %v285, %v537
    %v988 = vsel %vm930, %v286, %v539
    %v990 = vsel %vm930, %v287, %v541
    %v992 = vsel %vm930, %v288, %v543
    %v994 = vsel %vm930, %v289, %v545
    %vm995 = vcmask 261120
    %v997 = vsel %vm995, %v932, %v611
    %v999 = vsel %vm995, %v934, %v613
    %v1001 = vsel %vm995, %v936, %v615
    %v1003 = vsel %vm995, %v938, %v617
    %v1005 = vsel %vm995, %v940, %v619
    %v1007 = vsel %vm995, %v942, %v621
    %v1009 = vsel %vm995, %v944, %v623
    %v1011 = vsel %vm995, %v946, %v625
    %v1013 = vsel %vm995, %v948, %v627
    %v1015 = vsel %vm995, %v950, %v629
    %v1017 = vsel %vm995, %v952, %v631
    %v1019 = vsel %vm995, %v954, %v633
    %v1021 = vsel %vm995, %v956, %v635
    %v1023 = vsel %vm995, %v958, %v637
    %v1025 = vsel %vm995, %v960, %v639
    %v1027 = vsel %vm995, %v962, %v641
    %v1029 = vsel %vm995, %v964, %v643
    %v1031 = vsel %vm995, %v966, %v645
    %v1033 = vsel %vm995, %v968, %v647
    %v1035 = vsel %vm995, %v970, %v649
    %v1037 = vsel %vm995, %v972, %v651
    %v1039 = vsel %vm995, %v974, %v653
    %v1041 = vsel %vm995, %v976, %v655
    %v1043 = vsel %vm995, %v978, %v657
    %v1045 = vsel %vm995, %v980, %v659
    %v1047 = vsel %vm995, %v982, %v661
    %v1049 = vsel %vm995, %v984, %v663
    %v1051 = vsel %vm995, %v986, %v665
    %v1053 = vsel %vm995, %v988, %v667
    %v1055 = vsel %vm995, %v990, %v669
    %v1057 = vsel %vm995, %v992, %v671
    %v1059 = vsel %vm995, %v994, %v673
    %vm1060 = vcmask 392192
    %v1062 = vsel %vm1060, %v997, %v771
    %v1064 = vsel %vm1060, %v999, %v773
    %v1066 = vsel %vm1060, %v1001, %v775
    %v1068 = vsel %vm1060, %v1003, %v777
    %v1070 = vsel %vm1060, %v1005, %v779
    %v1072 = vsel %vm1060, %v1007, %v781
    %v1074 = vsel %vm1060, %v1009, %v783
    %v1076 = vsel %vm1060, %v1011, %v785
    %v1078 = vsel %vm1060, %v1013, %v787
    %v1080 = vsel %vm1060, %v1015, %v789
    %v1082 = vsel %vm1060, %v1017, %v791
    %v1084 = vsel %vm1060, %v1019, %v793
    %v1086 = vsel %vm1060, %v1021, %v795
    %v1088 = vsel %vm1060, %v1023, %v797
    %v1090 = vsel %vm1060, %v1025, %v799
    %v1092 = vsel %vm1060, %v1027, %v801
    %v1094 = vsel %vm1060, %v1029, %v803
    %v1096 = vsel %vm1060, %v1031, %v805
    %v1098 = vsel %vm1060, %v1033, %v807
    %v1100 = vsel %vm1060, %v1035, %v809
    %v1102 = vsel %vm1060, %v1037, %v811
    %v1104 = vsel %vm1060, %v1039, %v813
    %v1106 = vsel %vm1060, %v1041, %v815
    %v1108 = vsel %vm1060, %v1043, %v817
    %v1110 = vsel %vm1060, %v1045, %v819
    %v1112 = vsel %vm1060, %v1047, %v821
    %v1114 = vsel %vm1060, %v1049, %v823
    %v1116 = vsel %vm1060, %v1051, %v825
    %v1118 = vsel %vm1060, %v1053, %v827
    %v1120 = vsel %vm1060, %v1055, %v829
    %v1122 = vsel %vm1060, %v1057, %v831
    %v1124 = vsel %vm1060, %v1059, %v833
    %vm1125 = vcmask 523264
    %v1127 = vsel %vm1125, %v1062, %v867
    %v1129 = vsel %vm1125, %v1064, %v869
    %v1131 = vsel %vm1125, %v1066, %v871
    %v1133 = vsel %vm1125, %v1068, %v873
    %v1135 = vsel %vm1125, %v1070, %v875
    %v1137 = vsel %vm1125, %v1072, %v877
    %v1139 = vsel %vm1125, %v1074, %v879
    %v1141 = vsel %vm1125, %v1076, %v881
    %v1143 = vsel %vm1125, %v1078, %v883
    %v1145 = vsel %vm1125, %v1080, %v885
    %v1147 = vsel %vm1125, %v1082, %v887
    %v1149 = vsel %vm1125, %v1084, %v889
    %v1151 = vsel %vm1125, %v1086, %v891
    %v1153 = vsel %vm1125, %v1088, %v893
    %v1155 = vsel %vm1125, %v1090, %v895
    %v1157 = vsel %vm1125, %v1092, %v897
    %v1159 = vsel %vm1125, %v1094, %v899
    %v1161 = vsel %vm1125, %v1096, %v901
    %v1163 = vsel %vm1125, %v1098, %v903
    %v1165 = vsel %vm1125, %v1100, %v905
    %v1167 = vsel %vm1125, %v1102, %v907
    %v1169 = vsel %vm1125, %v1104, %v909
    %v1171 = vsel %vm1125, %v1106, %v911
    %v1173 = vsel %vm1125, %v1108, %v913
    %v1175 = vsel %vm1125, %v1110, %v915
    %v1177 = vsel %vm1125, %v1112, %v917
    %v1179 = vsel %vm1125, %v1114, %v919
    %v1181 = vsel %vm1125, %v1116, %v921
    %v1183 = vsel %vm1125, %v1118, %v923
    %v1185 = vsel %vm1125, %v1120, %v925
    %v1187 = vsel %vm1125, %v1122, %v927
    %v1189 = vsel %vm1125, %v1124, %v929
    %v1190 = vld [vmem:[%s2] sm:$0xf]
    %v1191 = vld [vmem:[%s2 + $0x4] sm:$0xf]
    %v1192 = vld [vmem:[%s2 + $0x8] sm:$0xf]
    %v1193 = vld [vmem:[%s2 + $0xc] sm:$0xf]
    %v1194 = vld [vmem:[%s2 + $0x10] sm:$0xf]
    %v1195 = vld [vmem:[%s2 + $0x14] sm:$0xf]
    %v1196 = vld [vmem:[%s2 + $0x18] sm:$0xf]
    %v1197 = vld [vmem:[%s2 + $0x1c] sm:$0xf]
    %v1198 = vld [vmem:[%s2 + $0x20] sm:$0xf]
    %v1199 = vld [vmem:[%s2 + $0x24] sm:$0xf]
    %v1200 = vld [vmem:[%s3] sm:$0x1]
    %v1202 = vlaneseq
    %v1203 = vshrl.u32 %v1202, 7
    %v1204 = vsub.s32 0, %v1203
    %v1205 = vrot.slane %v1200, %v1204
    %v1239 = vunpack.c.l.b16 %v1127
    %v1240 = vunpack.c.l.b16 %v1129
    %v1241 = vunpack.c.l.b16 %v1131
    %v1242 = vunpack.c.l.b16 %v1133
    %v1243 = vunpack.c.l.b16 %v1135
    %v1244 = vunpack.c.l.b16 %v1137
    %v1245 = vunpack.c.l.b16 %v1139
    %v1246 = vunpack.c.l.b16 %v1141
    %v1247 = vunpack.c.l.b16 %v1143
    %v1248 = vunpack.c.l.b16 %v1145
    %v1249 = vunpack.c.l.b16 %v1147
    %v1250 = vunpack.c.l.b16 %v1149
    %v1251 = vunpack.c.l.b16 %v1151
    %v1252 = vunpack.c.l.b16 %v1153
    %v1253 = vunpack.c.l.b16 %v1155
    %v1254 = vunpack.c.l.b16 %v1157
    %v1255 = vunpack.c.l.b16 %v1159
    %v1256 = vunpack.c.l.b16 %v1161
    %v1257 = vunpack.c.l.b16 %v1163
    %v1258 = vunpack.c.l.b16 %v1165
    %v1259 = vunpack.c.l.b16 %v1167
    %v1260 = vunpack.c.l.b16 %v1169
    %v1261 = vunpack.c.l.b16 %v1171
    %v1262 = vunpack.c.l.b16 %v1173
    %v1263 = vunpack.c.l.b16 %v1175
    %v1264 = vunpack.c.l.b16 %v1177
    %v1265 = vunpack.c.l.b16 %v1179
    %v1266 = vunpack.c.l.b16 %v1181
    %v1267 = vunpack.c.l.b16 %v1183
    %v1268 = vunpack.c.l.b16 %v1185
    %v1269 = vunpack.c.l.b16 %v1187
    %v1270 = vunpack.c.l.b16 %v1189
    %v1271 = vpack.c.b16 %v1240, %v1239
    %v1272 = vpack.c.b16 %v1242, %v1241
    %v1273 = vpack.c.b16 %v1244, %v1243
    %v1274 = vpack.c.b16 %v1246, %v1245
    %v1275 = vpack.c.b16 %v1248, %v1247
    %v1276 = vpack.c.b16 %v1250, %v1249
    %v1277 = vpack.c.b16 %v1252, %v1251
    %v1278 = vpack.c.b16 %v1254, %v1253
    %v1279 = vpack.c.b16 %v1256, %v1255
    %v1280 = vpack.c.b16 %v1258, %v1257
    %v1281 = vpack.c.b16 %v1260, %v1259
    %v1282 = vpack.c.b16 %v1262, %v1261
    %v1283 = vpack.c.b16 %v1264, %v1263
    %v1284 = vpack.c.b16 %v1266, %v1265
    %v1285 = vpack.c.b16 %v1268, %v1267
    %v1286 = vpack.c.b16 %v1270, %v1269
    %v1297 = vunpack.c.l.b16 %v1190
    %v1298 = vunpack.c.l.b16 %v1191
    %v1299 = vunpack.c.l.b16 %v1192
    %v1300 = vunpack.c.l.b16 %v1193
    %v1301 = vunpack.c.l.b16 %v1194
    %v1302 = vunpack.c.l.b16 %v1195
    %v1303 = vunpack.c.l.b16 %v1196
    %v1304 = vunpack.c.l.b16 %v1197
    %v1305 = vunpack.c.l.b16 %v1198
    %v1306 = vunpack.c.l.b16 %v1199
    %v1307 = vpack.c.b16 %v1298, %v1297
    %v1308 = vpack.c.b16 %v1300, %v1299
    %v1309 = vpack.c.b16 %v1302, %v1301
    %v1310 = vpack.c.b16 %v1304, %v1303
    %v1311 = vpack.c.b16 %v1306, %v1305
    %vm1317 = vcmask 654336
    %v1319 = vsel %vm1317, %v1271, 0
    %v1322 = vsel %vm1317, %v1272, 0
    %v1325 = vsel %vm1317, %v1273, 0
    %v1328 = vsel %vm1317, %v1274, 0
    %v1331 = vsel %vm1317, %v1275, 0
    %v1334 = vsel %vm1317, %v1276, 0
    %v1337 = vsel %vm1317, %v1277, 0
    %v1340 = vsel %vm1317, %v1278, 0
    %v1343 = vsel %vm1317, %v1279, 0
    %v1346 = vsel %vm1317, %v1280, 0
    %v1349 = vsel %vm1317, %v1281, 0
    %v1352 = vsel %vm1317, %v1282, 0
    %v1355 = vsel %vm1317, %v1283, 0
    %v1358 = vsel %vm1317, %v1284, 0
    %v1361 = vsel %vm1317, %v1285, 0
    %v1364 = vsel %vm1317, %v1286, 0
    %1366 = vmatprep.subr.bf16.mxu0 0
    %1367 = vmatpush1.bf16.msra.mxu0 0
    %1368 = vmatprep.subr.bf16.mxu0 0
    %1369 = vmatpush1.bf16.msra.mxu0 0
    %1370 = vmatprep.subr.bf16.mxu0 0
    %1371 = vmatpush1.bf16.msra.mxu0 0
    %1372 = vmatprep.subr.bf16.mxu0 0
    %1373 = vmatpush1.bf16.msra.mxu0 %v1311
    %1374 = vmatprep.subr.bf16.mxu0 0
    %1375 = vmatpush1.bf16.msra.mxu0 %v1310
    %1376 = vmatprep.subr.bf16.mxu0 0
    %1377 = vmatpush1.bf16.msra.mxu0 %v1309
    %1378 = vmatprep.subr.bf16.mxu0 0
    %1379 = vmatpush1.bf16.msra.mxu0 %v1308
    %1380 = vmatprep.subr.bf16.mxu0 0
    %1381 = vmatpush1.bf16.msra.mxu0 %v1307
    %1382 = vmatprep.subr.bf16.mxu0 0
    %1383 = vmatpush2.bf16.msra.mxu0 0
    %1384 = vmatprep.subr.bf16.mxu0 0
    %1385 = vmatpush2.bf16.msra.mxu0 0
    %1386 = vmatprep.subr.bf16.mxu0 0
    %1387 = vmatpush2.bf16.msra.mxu0 0
    %1388 = vmatprep.subr.bf16.mxu0 0
    %1389 = vmatpush2.bf16.msra.mxu0 0
    %1390 = vmatprep.subr.bf16.mxu0 0
    %1391 = vmatpush2.bf16.msra.mxu0 0
    %1392 = vmatprep.subr.bf16.mxu0 0
    %1393 = vmatpush2.bf16.msra.mxu0 0
    %1394 = vmatprep.subr.bf16.mxu0 0
    %1395 = vmatpush2.bf16.msra.mxu0 0
    %1396 = vmatprep.subr.bf16.mxu0 0
    %1397 = vmatpush2.bf16.msra.mxu0 0
    %1398 = vmatprep.mubr.bf16.mxu0 0
    %1399 = vmatmul.mubr.bf16.gmra.mxu0 %v1319
    %v1400 = vpop.f32.mrf.mxu0
    %v1401 = vadd.f32 %v1205, %v1400
    %v1402 = vpop.f32.mrf.mxu0
    %v1403 = vpop.f32.mrf.mxu0
    %v1404 = vadd.f32 %v1205, %v1403
    %v1405 = vpop.f32.mrf.mxu0
    %1406 = vmatprep.mubr.bf16.mxu0 0
    %1407 = vmatmul.mubr.bf16.gmra.mxu0 %v1322
    %v1408 = vpop.f32.mrf.mxu0
    %v1409 = vadd.f32 %v1205, %v1408
    %v1410 = vpop.f32.mrf.mxu0
    %v1411 = vpop.f32.mrf.mxu0
    %v1412 = vadd.f32 %v1205, %v1411
    %v1413 = vpop.f32.mrf.mxu0
    %1414 = vmatprep.mubr.bf16.mxu0 0
    %1415 = vmatmul.mubr.bf16.gmra.mxu0 %v1325
    %v1416 = vpop.f32.mrf.mxu0
    %v1417 = vadd.f32 %v1205, %v1416
    %v1418 = vpop.f32.mrf.mxu0
    %v1419 = vpop.f32.mrf.mxu0
    %v1420 = vadd.f32 %v1205, %v1419
    %v1421 = vpop.f32.mrf.mxu0
    %1422 = vmatprep.mubr.bf16.mxu0 0
    %1423 = vmatmul.mubr.bf16.gmra.mxu0 %v1328
    %v1424 = vpop.f32.mrf.mxu0
    %v1425 = vadd.f32 %v1205, %v1424
    %v1426 = vpop.f32.mrf.mxu0
    %v1427 = vpop.f32.mrf.mxu0
    %v1428 = vadd.f32 %v1205, %v1427
    %v1429 = vpop.f32.mrf.mxu0
    %1430 = vmatprep.mubr.bf16.mxu0 0
    %1431 = vmatmul.mubr.bf16.gmra.mxu0 %v1331
    %v1432 = vpop.f32.mrf.mxu0
    %v1433 = vadd.f32 %v1205, %v1432
    %v1434 = vpop.f32.mrf.mxu0
    %v1435 = vpop.f32.mrf.mxu0
    %v1436 = vadd.f32 %v1205, %v1435
    %v1437 = vpop.f32.mrf.mxu0
    %1438 = vmatprep.mubr.bf16.mxu0 0
    %1439 = vmatmul.mubr.bf16.gmra.mxu0 %v1334
    %v1440 = vpop.f32.mrf.mxu0
    %v1441 = vadd.f32 %v1205, %v1440
    %v1442 = vpop.f32.mrf.mxu0
    %v1443 = vpop.f32.mrf.mxu0
    %v1444 = vadd.f32 %v1205, %v1443
    %v1445 = vpop.f32.mrf.mxu0
    %1446 = vmatprep.mubr.bf16.mxu0 0
    %1447 = vmatmul.mubr.bf16.gmra.mxu0 %v1337
    %v1448 = vpop.f32.mrf.mxu0
    %v1449 = vadd.f32 %v1205, %v1448
    %v1450 = vpop.f32.mrf.mxu0
    %v1451 = vpop.f32.mrf.mxu0
    %v1452 = vadd.f32 %v1205, %v1451
    %v1453 = vpop.f32.mrf.mxu0
    %1454 = vmatprep.mubr.bf16.mxu0 0
    %1455 = vmatmul.mubr.bf16.gmra.mxu0 %v1340
    %v1456 = vpop.f32.mrf.mxu0
    %v1457 = vadd.f32 %v1205, %v1456
    %v1458 = vpop.f32.mrf.mxu0
    %v1459 = vpop.f32.mrf.mxu0
    %v1460 = vadd.f32 %v1205, %v1459
    %v1461 = vpop.f32.mrf.mxu0
    %1462 = vmatprep.mubr.bf16.mxu0 0
    %1463 = vmatmul.mubr.bf16.gmra.mxu0 %v1343
    %v1464 = vpop.f32.mrf.mxu0
    %v1465 = vadd.f32 %v1205, %v1464
    %v1466 = vpop.f32.mrf.mxu0
    %v1467 = vpop.f32.mrf.mxu0
    %v1468 = vadd.f32 %v1205, %v1467
    %v1469 = vpop.f32.mrf.mxu0
    %1470 = vmatprep.mubr.bf16.mxu0 0
    %1471 = vmatmul.mubr.bf16.gmra.mxu0 %v1346
    %v1472 = vpop.f32.mrf.mxu0
    %v1473 = vadd.f32 %v1205, %v1472
    %v1474 = vpop.f32.mrf.mxu0
    %v1475 = vpop.f32.mrf.mxu0
    %v1476 = vadd.f32 %v1205, %v1475
    %v1477 = vpop.f32.mrf.mxu0
    %1478 = vmatprep.mubr.bf16.mxu0 0
    %1479 = vmatmul.mubr.bf16.gmra.mxu0 %v1349
    %v1480 = vpop.f32.mrf.mxu0
    %v1481 = vadd.f32 %v1205, %v1480
    %v1482 = vpop.f32.mrf.mxu0
    %v1483 = vpop.f32.mrf.mxu0
    %v1484 = vadd.f32 %v1205, %v1483
    %v1485 = vpop.f32.mrf.mxu0
    %1486 = vmatprep.mubr.bf16.mxu0 0
    %1487 = vmatmul.mubr.bf16.gmra.mxu0 %v1352
    %v1488 = vpop.f32.mrf.mxu0
    %v1489 = vadd.f32 %v1205, %v1488
    %v1490 = vpop.f32.mrf.mxu0
    %v1491 = vpop.f32.mrf.mxu0
    %v1492 = vadd.f32 %v1205, %v1491
    %v1493 = vpop.f32.mrf.mxu0
    %1494 = vmatprep.mubr.bf16.mxu0 0
    %1495 = vmatmul.mubr.bf16.gmra.mxu0 %v1355
    %v1496 = vpop.f32.mrf.mxu0
    %v1497 = vadd.f32 %v1205, %v1496
    %v1498 = vpop.f32.mrf.mxu0
    %v1499 = vpop.f32.mrf.mxu0
    %v1500 = vadd.f32 %v1205, %v1499
    %v1501 = vpop.f32.mrf.mxu0
    %1502 = vmatprep.mubr.bf16.mxu0 0
    %1503 = vmatmul.mubr.bf16.gmra.mxu0 %v1358
    %v1504 = vpop.f32.mrf.mxu0
    %v1505 = vadd.f32 %v1205, %v1504
    %v1506 = vpop.f32.mrf.mxu0
    %v1507 = vpop.f32.mrf.mxu0
    %v1508 = vadd.f32 %v1205, %v1507
    %v1509 = vpop.f32.mrf.mxu0
    %1510 = vmatprep.mubr.bf16.mxu0 0
    %1511 = vmatmul.mubr.bf16.gmra.mxu0 %v1361
    %v1512 = vpop.f32.mrf.mxu0
    %v1513 = vadd.f32 %v1205, %v1512
    %v1514 = vpop.f32.mrf.mxu0
    %v1515 = vpop.f32.mrf.mxu0
    %v1516 = vadd.f32 %v1205, %v1515
    %v1517 = vpop.f32.mrf.mxu0
    %1518 = vmatprep.mubr.bf16.mxu0 0
    %1519 = vmatmul.mubr.bf16.gmra.mxu0 %v1364
    %v1520 = vpop.f32.mrf.mxu0
    %v1521 = vadd.f32 %v1205, %v1520
    %v1522 = vpop.f32.mrf.mxu0
    %v1523 = vpop.f32.mrf.mxu0
    %v1524 = vadd.f32 %v1205, %v1523
    %v1525 = vpop.f32.mrf.mxu0
    %1526 = vdwg.mxu0
    %v1527 = vmax.f32 %v1401, 0.0
    %v1528 = vmax.f32 %v1404, 0.0
    %v1529 = vmax.f32 %v1409, 0.0
    %v1530 = vmax.f32 %v1412, 0.0
    %v1531 = vmax.f32 %v1417, 0.0
    %v1532 = vmax.f32 %v1420, 0.0
    %v1533 = vmax.f32 %v1425, 0.0
    %v1534 = vmax.f32 %v1428, 0.0
    %v1535 = vmax.f32 %v1433, 0.0
    %v1536 = vmax.f32 %v1436, 0.0
    %v1537 = vmax.f32 %v1441, 0.0
    %v1538 = vmax.f32 %v1444, 0.0
    %v1539 = vmax.f32 %v1449, 0.0
    %v1540 = vmax.f32 %v1452, 0.0
    %v1541 = vmax.f32 %v1457, 0.0
    %v1542 = vmax.f32 %v1460, 0.0
    %v1543 = vmax.f32 %v1465, 0.0
    %v1544 = vmax.f32 %v1468, 0.0
    %v1545 = vmax.f32 %v1473, 0.0
    %v1546 = vmax.f32 %v1476, 0.0
    %v1547 = vmax.f32 %v1481, 0.0
    %v1548 = vmax.f32 %v1484, 0.0
    %v1549 = vmax.f32 %v1489, 0.0
    %v1550 = vmax.f32 %v1492, 0.0
    %v1551 = vmax.f32 %v1497, 0.0
    %v1552 = vmax.f32 %v1500, 0.0
    %v1553 = vmax.f32 %v1505, 0.0
    %v1554 = vmax.f32 %v1508, 0.0
    %v1555 = vmax.f32 %v1513, 0.0
    %v1556 = vmax.f32 %v1516, 0.0
    %v1557 = vmax.f32 %v1521, 0.0
    %v1558 = vmax.f32 %v1524, 0.0
    %v1559 = vpack.c.bf16 %v1528, %v1527
    %v1560 = vpack.c.bf16 %v1530, %v1529
    %v1561 = vpack.c.bf16 %v1532, %v1531
    %v1562 = vpack.c.bf16 %v1534, %v1533
    %v1563 = vpack.c.bf16 %v1536, %v1535
    %v1564 = vpack.c.bf16 %v1538, %v1537
    %v1565 = vpack.c.bf16 %v1540, %v1539
    %v1566 = vpack.c.bf16 %v1542, %v1541
    %v1567 = vpack.c.bf16 %v1544, %v1543
    %v1568 = vpack.c.bf16 %v1546, %v1545
    %v1569 = vpack.c.bf16 %v1548, %v1547
    %v1570 = vpack.c.bf16 %v1550, %v1549
    %v1571 = vpack.c.bf16 %v1552, %v1551
    %v1572 = vpack.c.bf16 %v1554, %v1553
    %v1573 = vpack.c.bf16 %v1556, %v1555
    %v1574 = vpack.c.bf16 %v1558, %v1557
    %v1575 = vld [vmem:[%s4] sm:$0xf]
    %v1576 = vld [vmem:[%s4 + $0x4] sm:$0xf]
    %v1577 = vld [vmem:[%s4 + $0x8] sm:$0xf]
    %v1578 = vld [vmem:[%s4 + $0xc] sm:$0xf]
    %v1579 = vld [vmem:[%s4 + $0x10] sm:$0xf]
    %v1580 = vld [vmem:[%s4 + $0x14] sm:$0xf]
    %v1581 = vld [vmem:[%s4 + $0x18] sm:$0xf]
    %v1582 = vld [vmem:[%s4 + $0x1c] sm:$0xf]
    %v1583 = vld [vmem:[%s4 + $0x20] sm:$0xf]
    %v1584 = vld [vmem:[%s4 + $0x24] sm:$0xf]
    %v1585 = vld [vmem:[%s4 + $0x28] sm:$0xf]
    %v1586 = vld [vmem:[%s4 + $0x2c] sm:$0xf]
    %v1587 = vld [vmem:[%s4 + $0x30] sm:$0xf]
    %v1588 = vld [vmem:[%s4 + $0x34] sm:$0xf]
    %v1589 = vld [vmem:[%s4 + $0x38] sm:$0xf]
    %v1590 = vld [vmem:[%s4 + $0x3c] sm:$0xf]
    %v1591 = vld [vmem:[%s5] sm:$0x1]
    %v1593 = vlaneseq
    %v1594 = vshrl.u32 %v1593, 7
    %v1595 = vsub.s32 0, %v1594
    %v1596 = vrot.slane %v1591, %v1595
    %v1614 = vunpack.c.l.b16 %v1575
    %v1615 = vunpack.c.l.b16 %v1576
    %v1616 = vunpack.c.l.b16 %v1577
    %v1617 = vunpack.c.l.b16 %v1578
    %v1618 = vunpack.c.l.b16 %v1579
    %v1619 = vunpack.c.l.b16 %v1580
    %v1620 = vunpack.c.l.b16 %v1581
    %v1621 = vunpack.c.l.b16 %v1582
    %v1622 = vunpack.c.l.b16 %v1583
    %v1623 = vunpack.c.l.b16 %v1584
    %v1624 = vunpack.c.l.b16 %v1585
    %v1625 = vunpack.c.l.b16 %v1586
    %v1626 = vunpack.c.l.b16 %v1587
    %v1627 = vunpack.c.l.b16 %v1588
    %v1628 = vunpack.c.l.b16 %v1589
    %v1629 = vunpack.c.l.b16 %v1590
    %v1630 = vpack.c.b16 %v1615, %v1614
    %v1631 = vpack.c.b16 %v1617, %v1616
    %v1632 = vpack.c.b16 %v1619, %v1618
    %v1633 = vpack.c.b16 %v1621, %v1620
    %v1634 = vpack.c.b16 %v1623, %v1622
    %v1635 = vpack.c.b16 %v1625, %v1624
    %v1636 = vpack.c.b16 %v1627, %v1626
    %v1637 = vpack.c.b16 %v1629, %v1628
    %1646 = vmatprep.subr.bf16.mxu0 0
    %1647 = vmatpush1.bf16.msra.mxu0 %v1637
    %1648 = vmatprep.subr.bf16.mxu0 0
    %1649 = vmatpush1.bf16.msra.mxu0 %v1636
    %1650 = vmatprep.subr.bf16.mxu0 0
    %1651 = vmatpush1.bf16.msra.mxu0 %v1635
    %1652 = vmatprep.subr.bf16.mxu0 0
    %1653 = vmatpush1.bf16.msra.mxu0 %v1634
    %1654 = vmatprep.subr.bf16.mxu0 0
    %1655 = vmatpush1.bf16.msra.mxu0 %v1633
    %1656 = vmatprep.subr.bf16.mxu0 0
    %1657 = vmatpush1.bf16.msra.mxu0 %v1632
    %1658 = vmatprep.subr.bf16.mxu0 0
    %1659 = vmatpush1.bf16.msra.mxu0 %v1631
    %1660 = vmatprep.subr.bf16.mxu0 0
    %1661 = vmatpush1.bf16.msra.mxu0 %v1630
    %1662 = vmatprep.subr.bf16.mxu0 0
    %1663 = vmatpush2.bf16.msra.mxu0 0
    %1664 = vmatprep.subr.bf16.mxu0 0
    %1665 = vmatpush2.bf16.msra.mxu0 0
    %1666 = vmatprep.subr.bf16.mxu0 0
    %1667 = vmatpush2.bf16.msra.mxu0 0
    %1668 = vmatprep.subr.bf16.mxu0 0
    %1669 = vmatpush2.bf16.msra.mxu0 0
    %1670 = vmatprep.subr.bf16.mxu0 0
    %1671 = vmatpush2.bf16.msra.mxu0 0
    %1672 = vmatprep.subr.bf16.mxu0 0
    %1673 = vmatpush2.bf16.msra.mxu0 0
    %1674 = vmatprep.subr.bf16.mxu0 0
    %1675 = vmatpush2.bf16.msra.mxu0 0
    %1676 = vmatprep.subr.bf16.mxu0 0
    %1677 = vmatpush2.bf16.msra.mxu0 0
    %1678 = vmatprep.mubr.bf16.mxu0 0
    %1679 = vmatmul.mubr.bf16.gmra.mxu0 %v1559
    %v1680 = vpop.f32.mrf.mxu0
    %v1681 = vadd.f32 %v1596, %v1680
    %v1682 = vpop.f32.mrf.mxu0
    %v1683 = vpop.f32.mrf.mxu0
    %v1684 = vadd.f32 %v1596, %v1683
    %v1685 = vpop.f32.mrf.mxu0
    %1686 = vmatprep.mubr.bf16.mxu0 0
    %1687 = vmatmul.mubr.bf16.gmra.mxu0 %v1560
    %v1688 = vpop.f32.mrf.mxu0
    %v1689 = vadd.f32 %v1596, %v1688
    %v1690 = vpop.f32.mrf.mxu0
    %v1691 = vpop.f32.mrf.mxu0
    %v1692 = vadd.f32 %v1596, %v1691
    %v1693 = vpop.f32.mrf.mxu0
    %1694 = vmatprep.mubr.bf16.mxu0 0
    %1695 = vmatmul.mubr.bf16.gmra.mxu0 %v1561
    %v1696 = vpop.f32.mrf.mxu0
    %v1697 = vadd.f32 %v1596, %v1696
    %v1698 = vpop.f32.mrf.mxu0
    %v1699 = vpop.f32.mrf.mxu0
    %v1700 = vadd.f32 %v1596, %v1699
    %v1701 = vpop.f32.mrf.mxu0
    %1702 = vmatprep.mubr.bf16.mxu0 0
    %1703 = vmatmul.mubr.bf16.gmra.mxu0 %v1562
    %v1704 = vpop.f32.mrf.mxu0
    %v1705 = vadd.f32 %v1596, %v1704
    %v1706 = vpop.f32.mrf.mxu0
    %v1707 = vpop.f32.mrf.mxu0
    %v1708 = vadd.f32 %v1596, %v1707
    %v1709 = vpop.f32.mrf.mxu0
    %1710 = vmatprep.mubr.bf16.mxu0 0
    %1711 = vmatmul.mubr.bf16.gmra.mxu0 %v1563
    %v1712 = vpop.f32.mrf.mxu0
    %v1713 = vadd.f32 %v1596, %v1712
    %v1714 = vpop.f32.mrf.mxu0
    %v1715 = vpop.f32.mrf.mxu0
    %v1716 = vadd.f32 %v1596, %v1715
    %v1717 = vpop.f32.mrf.mxu0
    %1718 = vmatprep.mubr.bf16.mxu0 0
    %1719 = vmatmul.mubr.bf16.gmra.mxu0 %v1564
    %v1720 = vpop.f32.mrf.mxu0
    %v1721 = vadd.f32 %v1596, %v1720
    %v1722 = vpop.f32.mrf.mxu0
    %v1723 = vpop.f32.mrf.mxu0
    %v1724 = vadd.f32 %v1596, %v1723
    %v1725 = vpop.f32.mrf.mxu0
    %1726 = vmatprep.mubr.bf16.mxu0 0
    %1727 = vmatmul.mubr.bf16.gmra.mxu0 %v1565
    %v1728 = vpop.f32.mrf.mxu0
    %v1729 = vadd.f32 %v1596, %v1728
    %v1730 = vpop.f32.mrf.mxu0
    %v1731 = vpop.f32.mrf.mxu0
    %v1732 = vadd.f32 %v1596, %v1731
    %v1733 = vpop.f32.mrf.mxu0
    %1734 = vmatprep.mubr.bf16.mxu0 0
    %1735 = vmatmul.mubr.bf16.gmra.mxu0 %v1566
    %v1736 = vpop.f32.mrf.mxu0
    %v1737 = vadd.f32 %v1596, %v1736
    %v1738 = vpop.f32.mrf.mxu0
    %v1739 = vpop.f32.mrf.mxu0
    %v1740 = vadd.f32 %v1596, %v1739
    %v1741 = vpop.f32.mrf.mxu0
    %1742 = vmatprep.mubr.bf16.mxu0 0
    %1743 = vmatmul.mubr.bf16.gmra.mxu0 %v1567
    %v1744 = vpop.f32.mrf.mxu0
    %v1745 = vadd.f32 %v1596, %v1744
    %v1746 = vpop.f32.mrf.mxu0
    %v1747 = vpop.f32.mrf.mxu0
    %v1748 = vadd.f32 %v1596, %v1747
    %v1749 = vpop.f32.mrf.mxu0
    %1750 = vmatprep.mubr.bf16.mxu0 0
    %1751 = vmatmul.mubr.bf16.gmra.mxu0 %v1568
    %v1752 = vpop.f32.mrf.mxu0
    %v1753 = vadd.f32 %v1596, %v1752
    %v1754 = vpop.f32.mrf.mxu0
    %v1755 = vpop.f32.mrf.mxu0
    %v1756 = vadd.f32 %v1596, %v1755
    %v1757 = vpop.f32.mrf.mxu0
    %1758 = vmatprep.mubr.bf16.mxu0 0
    %1759 = vmatmul.mubr.bf16.gmra.mxu0 %v1569
    %v1760 = vpop.f32.mrf.mxu0
    %v1761 = vadd.f32 %v1596, %v1760
    %v1762 = vpop.f32.mrf.mxu0
    %v1763 = vpop.f32.mrf.mxu0
    %v1764 = vadd.f32 %v1596, %v1763
    %v1765 = vpop.f32.mrf.mxu0
    %1766 = vmatprep.mubr.bf16.mxu0 0
    %1767 = vmatmul.mubr.bf16.gmra.mxu0 %v1570
    %v1768 = vpop.f32.mrf.mxu0
    %v1769 = vadd.f32 %v1596, %v1768
    %v1770 = vpop.f32.mrf.mxu0
    %v1771 = vpop.f32.mrf.mxu0
    %v1772 = vadd.f32 %v1596, %v1771
    %v1773 = vpop.f32.mrf.mxu0
    %1774 = vmatprep.mubr.bf16.mxu0 0
    %1775 = vmatmul.mubr.bf16.gmra.mxu0 %v1571
    %v1776 = vpop.f32.mrf.mxu0
    %v1777 = vadd.f32 %v1596, %v1776
    %v1778 = vpop.f32.mrf.mxu0
    %v1779 = vpop.f32.mrf.mxu0
    %v1780 = vadd.f32 %v1596, %v1779
    %v1781 = vpop.f32.mrf.mxu0
    %1782 = vmatprep.mubr.bf16.mxu0 0
    %1783 = vmatmul.mubr.bf16.gmra.mxu0 %v1572
    %v1784 = vpop.f32.mrf.mxu0
    %v1785 = vadd.f32 %v1596, %v1784
    %v1786 = vpop.f32.mrf.mxu0
    %v1787 = vpop.f32.mrf.mxu0
    %v1788 = vadd.f32 %v1596, %v1787
    %v1789 = vpop.f32.mrf.mxu0
    %1790 = vmatprep.mubr.bf16.mxu0 0
    %1791 = vmatmul.mubr.bf16.gmra.mxu0 %v1573
    %v1792 = vpop.f32.mrf.mxu0
    %v1793 = vadd.f32 %v1596, %v1792
    %v1794 = vpop.f32.mrf.mxu0
    %v1795 = vpop.f32.mrf.mxu0
    %v1796 = vadd.f32 %v1596, %v1795
    %v1797 = vpop.f32.mrf.mxu0
    %1798 = vmatprep.mubr.bf16.mxu0 0
    %1799 = vmatmul.mubr.bf16.gmra.mxu0 %v1574
    %v1800 = vpop.f32.mrf.mxu0
    %v1801 = vadd.f32 %v1596, %v1800
    %v1802 = vpop.f32.mrf.mxu0
    %v1803 = vpop.f32.mrf.mxu0
    %v1804 = vadd.f32 %v1596, %v1803
    %v1805 = vpop.f32.mrf.mxu0
    %1806 = vdwg.mxu0
    %v1807 = vld [vmem:[%s0] sm:$0xff]
    %v1808 = vld [vmem:[%s0 + $0x8] sm:$0xff]
    %v1809 = vld [vmem:[%s0 + $0x10] sm:$0xff]
    %v1810 = vld [vmem:[%s0 + $0x18] sm:$0xff]
    %v1811 = vcombine.high %v1807, %v1807
    %v1813 = vunpack.c.l.s4 1966171168
    %v1814 = vunpack.c.0.s8 %v1813
    %v1815 = vlaneseq
    %v1816 = vshrl.u32 %v1815, 7
    %v1817 = vsub.s32 %v1814, %v1816
    %v1818 = vrot.slane %v1807, %v1817
    %v1820 = vunpack.c.l.s4 1966171168
    %v1821 = vunpack.c.0.s8 %v1820
    %v1822 = vlaneseq
    %v1823 = vshrl.u32 %v1822, 7
    %v1824 = vsub.s32 %v1821, %v1823
    %v1825 = vrot.slane %v1811, %v1824
    %v1826 = vcombine.high %v1818, %v1818
    %v1827 = vcombine.high %v1825, %v1825
    %v1829 = vunpack.c.l.s4 1966171168
    %v1830 = vunpack.c.0.s8 %v1829
    %v1831 = vlaneseq
    %v1832 = vshrl.u32 %v1831, 7
    %v1833 = vsub.s32 %v1830, %v1832
    %v1834 = vrot.slane %v1818, %v1833
    %v1836 = vunpack.c.l.s4 1966171168
    %v1837 = vunpack.c.0.s8 %v1836
    %v1838 = vlaneseq
    %v1839 = vshrl.u32 %v1838, 7
    %v1840 = vsub.s32 %v1837, %v1839
    %v1841 = vrot.slane %v1825, %v1840
    %v1843 = vunpack.c.l.s4 1966171168
    %v1844 = vunpack.c.0.s8 %v1843
    %v1845 = vlaneseq
    %v1846 = vshrl.u32 %v1845, 7
    %v1847 = vsub.s32 %v1844, %v1846
    %v1848 = vrot.slane %v1826, %v1847
    %v1850 = vunpack.c.l.s4 1966171168
    %v1851 = vunpack.c.0.s8 %v1850
    %v1852 = vlaneseq
    %v1853 = vshrl.u32 %v1852, 7
    %v1854 = vsub.s32 %v1851, %v1853
    %v1855 = vrot.slane %v1827, %v1854
    %v1856 = vcombine.high %v1834, %v1834
    %v1857 = vcombine.high %v1841, %v1841
    %v1858 = vcombine.high %v1848, %v1848
    %v1859 = vcombine.high %v1855, %v1855
    %v1860 = vcombine.high %v1808, %v1808
    %v1862 = vunpack.c.l.s4 1966171168
    %v1863 = vunpack.c.0.s8 %v1862
    %v1864 = vlaneseq
    %v1865 = vshrl.u32 %v1864, 7
    %v1866 = vsub.s32 %v1863, %v1865
    %v1867 = vrot.slane %v1808, %v1866
    %v1869 = vunpack.c.l.s4 1966171168
    %v1870 = vunpack.c.0.s8 %v1869
    %v1871 = vlaneseq
    %v1872 = vshrl.u32 %v1871, 7
    %v1873 = vsub.s32 %v1870, %v1872
    %v1874 = vrot.slane %v1860, %v1873
    %v1875 = vcombine.high %v1867, %v1867
    %v1876 = vcombine.high %v1874, %v1874
    %v1878 = vunpack.c.l.s4 1966171168
    %v1879 = vunpack.c.0.s8 %v1878
    %v1880 = vlaneseq
    %v1881 = vshrl.u32 %v1880, 7
    %v1882 = vsub.s32 %v1879, %v1881
    %v1883 = vrot.slane %v1867, %v1882
    %v1885 = vunpack.c.l.s4 1966171168
    %v1886 = vunpack.c.0.s8 %v1885
    %v1887 = vlaneseq
    %v1888 = vshrl.u32 %v1887, 7
    %v1889 = vsub.s32 %v1886, %v1888
    %v1890 = vrot.slane %v1874, %v1889
    %v1892 = vunpack.c.l.s4 1966171168
    %v1893 = vunpack.c.0.s8 %v1892
    %v1894 = vlaneseq
    %v1895 = vshrl.u32 %v1894, 7
    %v1896 = vsub.s32 %v1893, %v1895
    %v1897 = vrot.slane %v1875, %v1896
    %v1899 = vunpack.c.l.s4 1966171168
    %v1900 = vunpack.c.0.s8 %v1899
    %v1901 = vlaneseq
    %v1902 = vshrl.u32 %v1901, 7
    %v1903 = vsub.s32 %v1900, %v1902
    %v1904 = vrot.slane %v1876, %v1903
    %v1905 = vcombine.high %v1883, %v1883
    %v1906 = vcombine.high %v1890, %v1890
    %v1907 = vcombine.high %v1897, %v1897
    %v1908 = vcombine.high %v1904, %v1904
    %v1909 = vcombine.high %v1809, %v1809
    %v1911 = vunpack.c.l.s4 1966171168
    %v1912 = vunpack.c.0.s8 %v1911
    %v1913 = vlaneseq
    %v1914 = vshrl.u32 %v1913, 7
    %v1915 = vsub.s32 %v1912, %v1914
    %v1916 = vrot.slane %v1809, %v1915
    %v1918 = vunpack.c.l.s4 1966171168
    %v1919 = vunpack.c.0.s8 %v1918
    %v1920 = vlaneseq
    %v1921 = vshrl.u32 %v1920, 7
    %v1922 = vsub.s32 %v1919, %v1921
    %v1923 = vrot.slane %v1909, %v1922
    %v1924 = vcombine.high %v1916, %v1916
    %v1925 = vcombine.high %v1923, %v1923
    %v1927 = vunpack.c.l.s4 1966171168
    %v1928 = vunpack.c.0.s8 %v1927
    %v1929 = vlaneseq
    %v1930 = vshrl.u32 %v1929, 7
    %v1931 = vsub.s32 %v1928, %v1930
    %v1932 = vrot.slane %v1916, %v1931
    %v1934 = vunpack.c.l.s4 1966171168
    %v1935 = vunpack.c.0.s8 %v1934
    %v1936 = vlaneseq
    %v1937 = vshrl.u32 %v1936, 7
    %v1938 = vsub.s32 %v1935, %v1937
    %v1939 = vrot.slane %v1923, %v1938
    %v1941 = vunpack.c.l.s4 1966171168
    %v1942 = vunpack.c.0.s8 %v1941
    %v1943 = vlaneseq
    %v1944 = vshrl.u32 %v1943, 7
    %v1945 = vsub.s32 %v1942, %v1944
    %v1946 = vrot.slane %v1924, %v1945
    %v1948 = vunpack.c.l.s4 1966171168
    %v1949 = vunpack.c.0.s8 %v1948
    %v1950 = vlaneseq
    %v1951 = vshrl.u32 %v1950, 7
    %v1952 = vsub.s32 %v1949, %v1951
    %v1953 = vrot.slane %v1925, %v1952
    %v1954 = vcombine.high %v1932, %v1932
    %v1955 = vcombine.high %v1939, %v1939
    %v1956 = vcombine.high %v1946, %v1946
    %v1957 = vcombine.high %v1953, %v1953
    %v1958 = vcombine.high %v1810, %v1810
    %v1960 = vunpack.c.l.s4 1966171168
    %v1961 = vunpack.c.0.s8 %v1960
    %v1962 = vlaneseq
    %v1963 = vshrl.u32 %v1962, 7
    %v1964 = vsub.s32 %v1961, %v1963
    %v1965 = vrot.slane %v1810, %v1964
    %v1967 = vunpack.c.l.s4 1966171168
    %v1968 = vunpack.c.0.s8 %v1967
    %v1969 = vlaneseq
    %v1970 = vshrl.u32 %v1969, 7
    %v1971 = vsub.s32 %v1968, %v1970
    %v1972 = vrot.slane %v1958, %v1971
    %v1973 = vcombine.high %v1965, %v1965
    %v1974 = vcombine.high %v1972, %v1972
    %v1976 = vunpack.c.l.s4 1966171168
    %v1977 = vunpack.c.0.s8 %v1976
    %v1978 = vlaneseq
    %v1979 = vshrl.u32 %v1978, 7
    %v1980 = vsub.s32 %v1977, %v1979
    %v1981 = vrot.slane %v1965, %v1980
    %v1983 = vunpack.c.l.s4 1966171168
    %v1984 = vunpack.c.0.s8 %v1983
    %v1985 = vlaneseq
    %v1986 = vshrl.u32 %v1985, 7
    %v1987 = vsub.s32 %v1984, %v1986
    %v1988 = vrot.slane %v1972, %v1987
    %v1990 = vunpack.c.l.s4 1966171168
    %v1991 = vunpack.c.0.s8 %v1990
    %v1992 = vlaneseq
    %v1993 = vshrl.u32 %v1992, 7
    %v1994 = vsub.s32 %v1991, %v1993
    %v1995 = vrot.slane %v1973, %v1994
    %v1997 = vunpack.c.l.s4 1966171168
    %v1998 = vunpack.c.0.s8 %v1997
    %v1999 = vlaneseq
    %v2000 = vshrl.u32 %v1999, 7
    %v2001 = vsub.s32 %v1998, %v2000
    %v2002 = vrot.slane %v1974, %v2001
    %v2003 = vcombine.high %v1981, %v1981
    %v2004 = vcombine.high %v1988, %v1988
    %v2005 = vcombine.high %v1995, %v1995
    %v2006 = vcombine.high %v2002, %v2002
    %v2007 = vlaneseq
    %v2008 = vshrl.u32 %v2007, 7
    %v2009 = vlaneseq
    %v2010 = vshrl.u32 %v2009, 7
    %v2011 = vsub.s32 0, %v2010
    %v2012 = vrot.slane %v1834, %v2011
    %v2013 = vlaneseq
    %v2014 = vshrl.u32 %v2013, 7
    %v2015 = vsub.s32 0, %v2014
    %v2016 = vrot.slane %v1848, %v2015
    %v2017 = vlaneseq
    %v2018 = vshrl.u32 %v2017, 7
    %v2019 = vsub.s32 0, %v2018
    %v2020 = vrot.slane %v1856, %v2019
    %v2021 = vlaneseq
    %v2022 = vshrl.u32 %v2021, 7
    %v2023 = vsub.s32 0, %v2022
    %v2024 = vrot.slane %v1858, %v2023
    %v2025 = vlaneseq
    %v2026 = vshrl.u32 %v2025, 7
    %v2027 = vsub.s32 0, %v2026
    %v2028 = vrot.slane %v1841, %v2027
    %v2029 = vlaneseq
    %v2030 = vshrl.u32 %v2029, 7
    %v2031 = vsub.s32 0, %v2030
    %v2032 = vrot.slane %v1855, %v2031
    %v2033 = vlaneseq
    %v2034 = vshrl.u32 %v2033, 7
    %v2035 = vsub.s32 0, %v2034
    %v2036 = vrot.slane %v1857, %v2035
    %v2037 = vlaneseq
    %v2038 = vshrl.u32 %v2037, 7
    %v2039 = vsub.s32 0, %v2038
    %v2040 = vrot.slane %v1859, %v2039
    %v2041 = vlaneseq
    %v2042 = vshrl.u32 %v2041, 7
    %v2043 = vsub.s32 0, %v2042
    %v2044 = vrot.slane %v1883, %v2043
    %v2045 = vlaneseq
    %v2046 = vshrl.u32 %v2045, 7
    %v2047 = vsub.s32 0, %v2046
    %v2048 = vrot.slane %v1897, %v2047
    %v2049 = vlaneseq
    %v2050 = vshrl.u32 %v2049, 7
    %v2051 = vsub.s32 0, %v2050
    %v2052 = vrot.slane %v1905, %v2051
    %v2053 = vlaneseq
    %v2054 = vshrl.u32 %v2053, 7
    %v2055 = vsub.s32 0, %v2054
    %v2056 = vrot.slane %v1907, %v2055
    %v2057 = vlaneseq
    %v2058 = vshrl.u32 %v2057, 7
    %v2059 = vsub.s32 0, %v2058
    %v2060 = vrot.slane %v1890, %v2059
    %v2061 = vlaneseq
    %v2062 = vshrl.u32 %v2061, 7
    %v2063 = vsub.s32 0, %v2062
    %v2064 = vrot.slane %v1904, %v2063
    %v2065 = vlaneseq
    %v2066 = vshrl.u32 %v2065, 7
    %v2067 = vsub.s32 0, %v2066
    %v2068 = vrot.slane %v1906, %v2067
    %v2069 = vlaneseq
    %v2070 = vshrl.u32 %v2069, 7
    %v2071 = vsub.s32 0, %v2070
    %v2072 = vrot.slane %v1908, %v2071
    %v2073 = vlaneseq
    %v2074 = vshrl.u32 %v2073, 7
    %v2075 = vsub.s32 0, %v2074
    %v2076 = vrot.slane %v1932, %v2075
    %v2077 = vlaneseq
    %v2078 = vshrl.u32 %v2077, 7
    %v2079 = vsub.s32 0, %v2078
    %v2080 = vrot.slane %v1946, %v2079
    %v2081 = vlaneseq
    %v2082 = vshrl.u32 %v2081, 7
    %v2083 = vsub.s32 0, %v2082
    %v2084 = vrot.slane %v1954, %v2083
    %v2085 = vlaneseq
    %v2086 = vshrl.u32 %v2085, 7
    %v2087 = vsub.s32 0, %v2086
    %v2088 = vrot.slane %v1956, %v2087
    %v2089 = vlaneseq
    %v2090 = vshrl.u32 %v2089, 7
    %v2091 = vsub.s32 0, %v2090
    %v2092 = vrot.slane %v1939, %v2091
    %v2093 = vlaneseq
    %v2094 = vshrl.u32 %v2093, 7
    %v2095 = vsub.s32 0, %v2094
    %v2096 = vrot.slane %v1953, %v2095
    %v2097 = vlaneseq
    %v2098 = vshrl.u32 %v2097, 7
    %v2099 = vsub.s32 0, %v2098
    %v2100 = vrot.slane %v1955, %v2099
    %v2101 = vlaneseq
    %v2102 = vshrl.u32 %v2101, 7
    %v2103 = vsub.s32 0, %v2102
    %v2104 = vrot.slane %v1957, %v2103
    %v2105 = vlaneseq
    %v2106 = vshrl.u32 %v2105, 7
    %v2107 = vsub.s32 0, %v2106
    %v2108 = vrot.slane %v1981, %v2107
    %v2109 = vlaneseq
    %v2110 = vshrl.u32 %v2109, 7
    %v2111 = vsub.s32 0, %v2110
    %v2112 = vrot.slane %v1995, %v2111
    %v2113 = vlaneseq
    %v2114 = vshrl.u32 %v2113, 7
    %v2115 = vsub.s32 0, %v2114
    %v2116 = vrot.slane %v2003, %v2115
    %v2117 = vlaneseq
    %v2118 = vshrl.u32 %v2117, 7
    %v2119 = vsub.s32 0, %v2118
    %v2120 = vrot.slane %v2005, %v2119
    %v2121 = vlaneseq
    %v2122 = vshrl.u32 %v2121, 7
    %v2123 = vsub.s32 0, %v2122
    %v2124 = vrot.slane %v1988, %v2123
    %v2125 = vlaneseq
    %v2126 = vshrl.u32 %v2125, 7
    %v2127 = vsub.s32 0, %v2126
    %v2128 = vrot.slane %v2002, %v2127
    %v2129 = vlaneseq
    %v2130 = vshrl.u32 %v2129, 7
    %v2131 = vsub.s32 0, %v2130
    %v2132 = vrot.slane %v2004, %v2131
    %v2133 = vlaneseq
    %v2134 = vshrl.u32 %v2133, 7
    %v2135 = vsub.s32 0, %v2134
    %v2136 = vrot.slane %v2006, %v2135
    %vm2137 = vcmp.lt.s32.totalorder %v2008, %v2012
    %vm2138 = vcmp.lt.s32.totalorder %v2008, %v2016
    %vm2139 = vcmp.lt.s32.totalorder %v2008, %v2020
    %vm2140 = vcmp.lt.s32.totalorder %v2008, %v2024
    %vm2141 = vcmp.lt.s32.totalorder %v2008, %v2028
    %vm2142 = vcmp.lt.s32.totalorder %v2008, %v2032
    %vm2143 = vcmp.lt.s32.totalorder %v2008, %v2036
    %vm2144 = vcmp.lt.s32.totalorder %v2008, %v2040
    %vm2145 = vcmp.lt.s32.totalorder %v2008, %v2044
    %vm2146 = vcmp.lt.s32.totalorder %v2008, %v2048
    %vm2147 = vcmp.lt.s32.totalorder %v2008, %v2052
    %vm2148 = vcmp.lt.s32.totalorder %v2008, %v2056
    %vm2149 = vcmp.lt.s32.totalorder %v2008, %v2060
    %vm2150 = vcmp.lt.s32.totalorder %v2008, %v2064
    %vm2151 = vcmp.lt.s32.totalorder %v2008, %v2068
    %vm2152 = vcmp.lt.s32.totalorder %v2008, %v2072
    %vm2153 = vcmp.lt.s32.totalorder %v2008, %v2076
    %vm2154 = vcmp.lt.s32.totalorder %v2008, %v2080
    %vm2155 = vcmp.lt.s32.totalorder %v2008, %v2084
    %vm2156 = vcmp.lt.s32.totalorder %v2008, %v2088
    %vm2157 = vcmp.lt.s32.totalorder %v2008, %v2092
    %vm2158 = vcmp.lt.s32.totalorder %v2008, %v2096
    %vm2159 = vcmp.lt.s32.totalorder %v2008, %v2100
    %vm2160 = vcmp.lt.s32.totalorder %v2008, %v2104
    %vm2161 = vcmp.lt.s32.totalorder %v2008, %v2108
    %vm2162 = vcmp.lt.s32.totalorder %v2008, %v2112
    %vm2163 = vcmp.lt.s32.totalorder %v2008, %v2116
    %vm2164 = vcmp.lt.s32.totalorder %v2008, %v2120
    %vm2165 = vcmp.lt.s32.totalorder %v2008, %v2124
    %vm2166 = vcmp.lt.s32.totalorder %v2008, %v2128
    %vm2167 = vcmp.lt.s32.totalorder %v2008, %v2132
    %vm2168 = vcmp.lt.s32.totalorder %v2008, %v2136
    %v2169 = vsel %vm2137, 1, 0
    %v2170 = vsel %vm2138, 1, 0
    %v2171 = vsel %vm2139, 1, 0
    %v2172 = vsel %vm2140, 1, 0
    %v2173 = vsel %vm2141, 1, 0
    %v2174 = vsel %vm2142, 1, 0
    %v2175 = vsel %vm2143, 1, 0
    %v2176 = vsel %vm2144, 1, 0
    %v2177 = vsel %vm2145, 1, 0
    %v2178 = vsel %vm2146, 1, 0
    %v2179 = vsel %vm2147, 1, 0
    %v2180 = vsel %vm2148, 1, 0
    %v2181 = vsel %vm2149, 1, 0
    %v2182 = vsel %vm2150, 1, 0
    %v2183 = vsel %vm2151, 1, 0
    %v2184 = vsel %vm2152, 1, 0
    %v2185 = vsel %vm2153, 1, 0
    %v2186 = vsel %vm2154, 1, 0
    %v2187 = vsel %vm2155, 1, 0
    %v2188 = vsel %vm2156, 1, 0
    %v2189 = vsel %vm2157, 1, 0
    %v2190 = vsel %vm2158, 1, 0
    %v2191 = vsel %vm2159, 1, 0
    %v2192 = vsel %vm2160, 1, 0
    %v2193 = vsel %vm2161, 1, 0
    %v2194 = vsel %vm2162, 1, 0
    %v2195 = vsel %vm2163, 1, 0
    %v2196 = vsel %vm2164, 1, 0
    %v2197 = vsel %vm2165, 1, 0
    %v2198 = vsel %vm2166, 1, 0
    %v2199 = vsel %vm2167, 1, 0
    %v2200 = vsel %vm2168, 1, 0
    %v2201 = vcvt.s32.f32 %v2169
    %v2202 = vcvt.s32.f32 %v2170
    %v2203 = vcvt.s32.f32 %v2171
    %v2204 = vcvt.s32.f32 %v2172
    %v2205 = vcvt.s32.f32 %v2173
    %v2206 = vcvt.s32.f32 %v2174
    %v2207 = vcvt.s32.f32 %v2175
    %v2208 = vcvt.s32.f32 %v2176
    %v2209 = vcvt.s32.f32 %v2177
    %v2210 = vcvt.s32.f32 %v2178
    %v2211 = vcvt.s32.f32 %v2179
    %v2212 = vcvt.s32.f32 %v2180
    %v2213 = vcvt.s32.f32 %v2181
    %v2214 = vcvt.s32.f32 %v2182
    %v2215 = vcvt.s32.f32 %v2183
    %v2216 = vcvt.s32.f32 %v2184
    %v2217 = vcvt.s32.f32 %v2185
    %v2218 = vcvt.s32.f32 %v2186
    %v2219 = vcvt.s32.f32 %v2187
    %v2220 = vcvt.s32.f32 %v2188
    %v2221 = vcvt.s32.f32 %v2189
    %v2222 = vcvt.s32.f32 %v2190
    %v2223 = vcvt.s32.f32 %v2191
    %v2224 = vcvt.s32.f32 %v2192
    %v2225 = vcvt.s32.f32 %v2193
    %v2226 = vcvt.s32.f32 %v2194
    %v2227 = vcvt.s32.f32 %v2195
    %v2228 = vcvt.s32.f32 %v2196
    %v2229 = vcvt.s32.f32 %v2197
    %v2230 = vcvt.s32.f32 %v2198
    %v2231 = vcvt.s32.f32 %v2199
    %v2232 = vcvt.s32.f32 %v2200
    %v2233 = vsub.f32 1.0, %v2201
    %v2234 = vsub.f32 1.0, %v2202
    %v2235 = vsub.f32 1.0, %v2203
    %v2236 = vsub.f32 1.0, %v2204
    %v2237 = vsub.f32 1.0, %v2205
    %v2238 = vsub.f32 1.0, %v2206
    %v2239 = vsub.f32 1.0, %v2207
    %v2240 = vsub.f32 1.0, %v2208
    %v2241 = vsub.f32 1.0, %v2209
    %v2242 = vsub.f32 1.0, %v2210
    %v2243 = vsub.f32 1.0, %v2211
    %v2244 = vsub.f32 1.0, %v2212
    %v2245 = vsub.f32 1.0, %v2213
    %v2246 = vsub.f32 1.0, %v2214
    %v2247 = vsub.f32 1.0, %v2215
    %v2248 = vsub.f32 1.0, %v2216
    %v2249 = vsub.f32 1.0, %v2217
    %v2250 = vsub.f32 1.0, %v2218
    %v2251 = vsub.f32 1.0, %v2219
    %v2252 = vsub.f32 1.0, %v2220
    %v2253 = vsub.f32 1.0, %v2221
    %v2254 = vsub.f32 1.0, %v2222
    %v2255 = vsub.f32 1.0, %v2223
    %v2256 = vsub.f32 1.0, %v2224
    %v2257 = vsub.f32 1.0, %v2225
    %v2258 = vsub.f32 1.0, %v2226
    %v2259 = vsub.f32 1.0, %v2227
    %v2260 = vsub.f32 1.0, %v2228
    %v2261 = vsub.f32 1.0, %v2229
    %v2262 = vsub.f32 1.0, %v2230
    %v2263 = vsub.f32 1.0, %v2231
    %v2264 = vsub.f32 1.0, %v2232
    %v2265 = vmul.f32 %v2233, 1e+23
    %v2266 = vmul.f32 %v2234, 1e+23
    %v2267 = vmul.f32 %v2235, 1e+23
    %v2268 = vmul.f32 %v2236, 1e+23
    %v2269 = vmul.f32 %v2237, 1e+23
    %v2270 = vmul.f32 %v2238, 1e+23
    %v2271 = vmul.f32 %v2239, 1e+23
    %v2272 = vmul.f32 %v2240, 1e+23
    %v2273 = vmul.f32 %v2241, 1e+23
    %v2274 = vmul.f32 %v2242, 1e+23
    %v2275 = vmul.f32 %v2243, 1e+23
    %v2276 = vmul.f32 %v2244, 1e+23
    %v2277 = vmul.f32 %v2245, 1e+23
    %v2278 = vmul.f32 %v2246, 1e+23
    %v2279 = vmul.f32 %v2247, 1e+23
    %v2280 = vmul.f32 %v2248, 1e+23
    %v2281 = vmul.f32 %v2249, 1e+23
    %v2282 = vmul.f32 %v2250, 1e+23
    %v2283 = vmul.f32 %v2251, 1e+23
    %v2284 = vmul.f32 %v2252, 1e+23
    %v2285 = vmul.f32 %v2253, 1e+23
    %v2286 = vmul.f32 %v2254, 1e+23
    %v2287 = vmul.f32 %v2255, 1e+23
    %v2288 = vmul.f32 %v2256, 1e+23
    %v2289 = vmul.f32 %v2257, 1e+23
    %v2290 = vmul.f32 %v2258, 1e+23
    %v2291 = vmul.f32 %v2259, 1e+23
    %v2292 = vmul.f32 %v2260, 1e+23
    %v2293 = vmul.f32 %v2261, 1e+23
    %v2294 = vmul.f32 %v2262, 1e+23
    %v2295 = vmul.f32 %v2263, 1e+23
    %v2296 = vmul.f32 %v2264, 1e+23
    %2298 = vset.pattern.permute.xlu0 0
    %2299 = vperm.xlu0 %2298, %v2265
    %v2300 = vpop.permute.xlu0 %2299
    %2303 = vset.pattern.permute.xlu0 0
    %2304 = vperm.xlu0 %2303, %v2266
    %v2305 = vpop.permute.xlu0 %2304
    %2308 = vset.pattern.permute.xlu0 0
    %2309 = vperm.xlu0 %2308, %v2267
    %v2310 = vpop.permute.xlu0 %2309
    %2313 = vset.pattern.permute.xlu0 0
    %2314 = vperm.xlu0 %2313, %v2268
    %v2315 = vpop.permute.xlu0 %2314
    %2318 = vset.pattern.permute.xlu0 0
    %2319 = vperm.xlu0 %2318, %v2269
    %v2320 = vpop.permute.xlu0 %2319
    %2323 = vset.pattern.permute.xlu0 0
    %2324 = vperm.xlu0 %2323, %v2270
    %v2325 = vpop.permute.xlu0 %2324
    %2328 = vset.pattern.permute.xlu0 0
    %2329 = vperm.xlu0 %2328, %v2271
    %v2330 = vpop.permute.xlu0 %2329
    %2333 = vset.pattern.permute.xlu0 0
    %2334 = vperm.xlu0 %2333, %v2272
    %v2335 = vpop.permute.xlu0 %2334
    %2338 = vset.pattern.permute.xlu0 0
    %2339 = vperm.xlu0 %2338, %v2273
    %v2340 = vpop.permute.xlu0 %2339
    %2343 = vset.pattern.permute.xlu0 0
    %2344 = vperm.xlu0 %2343, %v2274
    %v2345 = vpop.permute.xlu0 %2344
    %2348 = vset.pattern.permute.xlu0 0
    %2349 = vperm.xlu0 %2348, %v2275
    %v2350 = vpop.permute.xlu0 %2349
    %2353 = vset.pattern.permute.xlu0 0
    %2354 = vperm.xlu0 %2353, %v2276
    %v2355 = vpop.permute.xlu0 %2354
    %2358 = vset.pattern.permute.xlu0 0
    %2359 = vperm.xlu0 %2358, %v2277
    %v2360 = vpop.permute.xlu0 %2359
    %2363 = vset.pattern.permute.xlu0 0
    %2364 = vperm.xlu0 %2363, %v2278
    %v2365 = vpop.permute.xlu0 %2364
    %2368 = vset.pattern.permute.xlu0 0
    %2369 = vperm.xlu0 %2368, %v2279
    %v2370 = vpop.permute.xlu0 %2369
    %2373 = vset.pattern.permute.xlu0 0
    %2374 = vperm.xlu0 %2373, %v2280
    %v2375 = vpop.permute.xlu0 %2374
    %2378 = vset.pattern.permute.xlu0 0
    %2379 = vperm.xlu0 %2378, %v2281
    %v2380 = vpop.permute.xlu0 %2379
    %2383 = vset.pattern.permute.xlu0 0
    %2384 = vperm.xlu0 %2383, %v2282
    %v2385 = vpop.permute.xlu0 %2384
    %2388 = vset.pattern.permute.xlu0 0
    %2389 = vperm.xlu0 %2388, %v2283
    %v2390 = vpop.permute.xlu0 %2389
    %2393 = vset.pattern.permute.xlu0 0
    %2394 = vperm.xlu0 %2393, %v2284
    %v2395 = vpop.permute.xlu0 %2394
    %2398 = vset.pattern.permute.xlu0 0
    %2399 = vperm.xlu0 %2398, %v2285
    %v2400 = vpop.permute.xlu0 %2399
    %2403 = vset.pattern.permute.xlu0 0
    %2404 = vperm.xlu0 %2403, %v2286
    %v2405 = vpop.permute.xlu0 %2404
    %2408 = vset.pattern.permute.xlu0 0
    %2409 = vperm.xlu0 %2408, %v2287
    %v2410 = vpop.permute.xlu0 %2409
    %2413 = vset.pattern.permute.xlu0 0
    %2414 = vperm.xlu0 %2413, %v2288
    %v2415 = vpop.permute.xlu0 %2414
    %2418 = vset.pattern.permute.xlu0 0
    %2419 = vperm.xlu0 %2418, %v2289
    %v2420 = vpop.permute.xlu0 %2419
    %2423 = vset.pattern.permute.xlu0 0
    %2424 = vperm.xlu0 %2423, %v2290
    %v2425 = vpop.permute.xlu0 %2424
    %2428 = vset.pattern.permute.xlu0 0
    %2429 = vperm.xlu0 %2428, %v2291
    %v2430 = vpop.permute.xlu0 %2429
    %2433 = vset.pattern.permute.xlu0 0
    %2434 = vperm.xlu0 %2433, %v2292
    %v2435 = vpop.permute.xlu0 %2434
    %2438 = vset.pattern.permute.xlu0 0
    %2439 = vperm.xlu0 %2438, %v2293
    %v2440 = vpop.permute.xlu0 %2439
    %2443 = vset.pattern.permute.xlu0 0
    %2444 = vperm.xlu0 %2443, %v2294
    %v2445 = vpop.permute.xlu0 %2444
    %2448 = vset.pattern.permute.xlu0 0
    %2449 = vperm.xlu0 %2448, %v2295
    %v2450 = vpop.permute.xlu0 %2449
    %2453 = vset.pattern.permute.xlu0 0
    %2454 = vperm.xlu0 %2453, %v2296
    %v2455 = vpop.permute.xlu0 %2454
    %v2457 = vsub.f32 %v1681, %v2300
    %v2458 = vsub.f32 %v1684, %v2305
    %v2459 = vsub.f32 %v1689, %v2310
    %v2460 = vsub.f32 %v1692, %v2315
    %v2461 = vsub.f32 %v1697, %v2320
    %v2462 = vsub.f32 %v1700, %v2325
    %v2463 = vsub.f32 %v1705, %v2330
    %v2464 = vsub.f32 %v1708, %v2335
    %v2465 = vsub.f32 %v1713, %v2340
    %v2466 = vsub.f32 %v1716, %v2345
    %v2467 = vsub.f32 %v1721, %v2350
    %v2468 = vsub.f32 %v1724, %v2355
    %v2469 = vsub.f32 %v1729, %v2360
    %v2470 = vsub.f32 %v1732, %v2365
    %v2471 = vsub.f32 %v1737, %v2370
    %v2472 = vsub.f32 %v1740, %v2375
    %v2473 = vsub.f32 %v1745, %v2380
    %v2474 = vsub.f32 %v1748, %v2385
    %v2475 = vsub.f32 %v1753, %v2390
    %v2476 = vsub.f32 %v1756, %v2395
    %v2477 = vsub.f32 %v1761, %v2400
    %v2478 = vsub.f32 %v1764, %v2405
    %v2479 = vsub.f32 %v1769, %v2410
    %v2480 = vsub.f32 %v1772, %v2415
    %v2481 = vsub.f32 %v1777, %v2420
    %v2482 = vsub.f32 %v1780, %v2425
    %v2483 = vsub.f32 %v1785, %v2430
    %v2484 = vsub.f32 %v1788, %v2435
    %v2485 = vsub.f32 %v1793, %v2440
    %v2486 = vsub.f32 %v1796, %v2445
    %v2487 = vsub.f32 %v1801, %v2450
    %v2488 = vsub.f32 %v1804, %v2455
    %v2489 = vrot.slane %v2457, 4
    %v2490 = vmax.f32 %v2457, %v2489
    %v2491 = vrot.slane %v2490, 2
    %v2492 = vmax.f32 %v2490, %v2491
    %v2493 = vrot.slane %v2492, 1
    %v2494 = vmax.f32 %v2492, %v2493
    %v2495 = vrot.slane %v2458, 4
    %v2496 = vmax.f32 %v2458, %v2495
    %v2497 = vrot.slane %v2496, 2
    %v2498 = vmax.f32 %v2496, %v2497
    %v2499 = vrot.slane %v2498, 1
    %v2500 = vmax.f32 %v2498, %v2499
    %v2501 = vrot.slane %v2459, 4
    %v2502 = vmax.f32 %v2459, %v2501
    %v2503 = vrot.slane %v2502, 2
    %v2504 = vmax.f32 %v2502, %v2503
    %v2505 = vrot.slane %v2504, 1
    %v2506 = vmax.f32 %v2504, %v2505
    %v2507 = vrot.slane %v2460, 4
    %v2508 = vmax.f32 %v2460, %v2507
    %v2509 = vrot.slane %v2508, 2
    %v2510 = vmax.f32 %v2508, %v2509
    %v2511 = vrot.slane %v2510, 1
    %v2512 = vmax.f32 %v2510, %v2511
    %v2513 = vrot.slane %v2461, 4
    %v2514 = vmax.f32 %v2461, %v2513
    %v2515 = vrot.slane %v2514, 2
    %v2516 = vmax.f32 %v2514, %v2515
    %v2517 = vrot.slane %v2516, 1
    %v2518 = vmax.f32 %v2516, %v2517
    %v2519 = vrot.slane %v2462, 4
    %v2520 = vmax.f32 %v2462, %v2519
    %v2521 = vrot.slane %v2520, 2
    %v2522 = vmax.f32 %v2520, %v2521
    %v2523 = vrot.slane %v2522, 1
    %v2524 = vmax.f32 %v2522, %v2523
    %v2525 = vrot.slane %v2463, 4
    %v2526 = vmax.f32 %v2463, %v2525
    %v2527 = vrot.slane %v2526, 2
    %v2528 = vmax.f32 %v2526, %v2527
    %v2529 = vrot.slane %v2528, 1
    %v2530 = vmax.f32 %v2528, %v2529
    %v2531 = vrot.slane %v2464, 4
    %v2532 = vmax.f32 %v2464, %v2531
    %v2533 = vrot.slane %v2532, 2
    %v2534 = vmax.f32 %v2532, %v2533
    %v2535 = vrot.slane %v2534, 1
    %v2536 = vmax.f32 %v2534, %v2535
    %v2537 = vrot.slane %v2465, 4
    %v2538 = vmax.f32 %v2465, %v2537
    %v2539 = vrot.slane %v2538, 2
    %v2540 = vmax.f32 %v2538, %v2539
    %v2541 = vrot.slane %v2540, 1
    %v2542 = vmax.f32 %v2540, %v2541
    %v2543 = vrot.slane %v2466, 4
    %v2544 = vmax.f32 %v2466, %v2543
    %v2545 = vrot.slane %v2544, 2
    %v2546 = vmax.f32 %v2544, %v2545
    %v2547 = vrot.slane %v2546, 1
    %v2548 = vmax.f32 %v2546, %v2547
    %v2549 = vrot.slane %v2467, 4
    %v2550 = vmax.f32 %v2467, %v2549
    %v2551 = vrot.slane %v2550, 2
    %v2552 = vmax.f32 %v2550, %v2551
    %v2553 = vrot.slane %v2552, 1
    %v2554 = vmax.f32 %v2552, %v2553
    %v2555 = vrot.slane %v2468, 4
    %v2556 = vmax.f32 %v2468, %v2555
    %v2557 = vrot.slane %v2556, 2
    %v2558 = vmax.f32 %v2556, %v2557
    %v2559 = vrot.slane %v2558, 1
    %v2560 = vmax.f32 %v2558, %v2559
    %v2561 = vrot.slane %v2469, 4
    %v2562 = vmax.f32 %v2469, %v2561
    %v2563 = vrot.slane %v2562, 2
    %v2564 = vmax.f32 %v2562, %v2563
    %v2565 = vrot.slane %v2564, 1
    %v2566 = vmax.f32 %v2564, %v2565
    %v2567 = vrot.slane %v2470, 4
    %v2568 = vmax.f32 %v2470, %v2567
    %v2569 = vrot.slane %v2568, 2
    %v2570 = vmax.f32 %v2568, %v2569
    %v2571 = vrot.slane %v2570, 1
    %v2572 = vmax.f32 %v2570, %v2571
    %v2573 = vrot.slane %v2471, 4
    %v2574 = vmax.f32 %v2471, %v2573
    %v2575 = vrot.slane %v2574, 2
    %v2576 = vmax.f32 %v2574, %v2575
    %v2577 = vrot.slane %v2576, 1
    %v2578 = vmax.f32 %v2576, %v2577
    %v2579 = vrot.slane %v2472, 4
    %v2580 = vmax.f32 %v2472, %v2579
    %v2581 = vrot.slane %v2580, 2
    %v2582 = vmax.f32 %v2580, %v2581
    %v2583 = vrot.slane %v2582, 1
    %v2584 = vmax.f32 %v2582, %v2583
    %v2585 = vrot.slane %v2473, 4
    %v2586 = vmax.f32 %v2473, %v2585
    %v2587 = vrot.slane %v2586, 2
    %v2588 = vmax.f32 %v2586, %v2587
    %v2589 = vrot.slane %v2588, 1
    %v2590 = vmax.f32 %v2588, %v2589
    %v2591 = vrot.slane %v2474, 4
    %v2592 = vmax.f32 %v2474, %v2591
    %v2593 = vrot.slane %v2592, 2
    %v2594 = vmax.f32 %v2592, %v2593
    %v2595 = vrot.slane %v2594, 1
    %v2596 = vmax.f32 %v2594, %v2595
    %v2597 = vrot.slane %v2475, 4
    %v2598 = vmax.f32 %v2475, %v2597
    %v2599 = vrot.slane %v2598, 2
    %v2600 = vmax.f32 %v2598, %v2599
    %v2601 = vrot.slane %v2600, 1
    %v2602 = vmax.f32 %v2600, %v2601
    %v2603 = vrot.slane %v2476, 4
    %v2604 = vmax.f32 %v2476, %v2603
    %v2605 = vrot.slane %v2604, 2
    %v2606 = vmax.f32 %v2604, %v2605
    %v2607 = vrot.slane %v2606, 1
    %v2608 = vmax.f32 %v2606, %v2607
    %v2609 = vrot.slane %v2477, 4
    %v2610 = vmax.f32 %v2477, %v2609
    %v2611 = vrot.slane %v2610, 2
    %v2612 = vmax.f32 %v2610, %v2611
    %v2613 = vrot.slane %v2612, 1
    %v2614 = vmax.f32 %v2612, %v2613
    %v2615 = vrot.slane %v2478, 4
    %v2616 = vmax.f32 %v2478, %v2615
    %v2617 = vrot.slane %v2616, 2
    %v2618 = vmax.f32 %v2616, %v2617
    %v2619 = vrot.slane %v2618, 1
    %v2620 = vmax.f32 %v2618, %v2619
    %v2621 = vrot.slane %v2479, 4
    %v2622 = vmax.f32 %v2479, %v2621
    %v2623 = vrot.slane %v2622, 2
    %v2624 = vmax.f32 %v2622, %v2623
    %v2625 = vrot.slane %v2624, 1
    %v2626 = vmax.f32 %v2624, %v2625
    %v2627 = vrot.slane %v2480, 4
    %v2628 = vmax.f32 %v2480, %v2627
    %v2629 = vrot.slane %v2628, 2
    %v2630 = vmax.f32 %v2628, %v2629
    %v2631 = vrot.slane %v2630, 1
    %v2632 = vmax.f32 %v2630, %v2631
    %v2633 = vrot.slane %v2481, 4
    %v2634 = vmax.f32 %v2481, %v2633
    %v2635 = vrot.slane %v2634, 2
    %v2636 = vmax.f32 %v2634, %v2635
    %v2637 = vrot.slane %v2636, 1
    %v2638 = vmax.f32 %v2636, %v2637
    %v2639 = vrot.slane %v2482, 4
    %v2640 = vmax.f32 %v2482, %v2639
    %v2641 = vrot.slane %v2640, 2
    %v2642 = vmax.f32 %v2640, %v2641
    %v2643 = vrot.slane %v2642, 1
    %v2644 = vmax.f32 %v2642, %v2643
    %v2645 = vrot.slane %v2483, 4
    %v2646 = vmax.f32 %v2483, %v2645
    %v2647 = vrot.slane %v2646, 2
    %v2648 = vmax.f32 %v2646, %v2647
    %v2649 = vrot.slane %v2648, 1
    %v2650 = vmax.f32 %v2648, %v2649
    %v2651 = vrot.slane %v2484, 4
    %v2652 = vmax.f32 %v2484, %v2651
    %v2653 = vrot.slane %v2652, 2
    %v2654 = vmax.f32 %v2652, %v2653
    %v2655 = vrot.slane %v2654, 1
    %v2656 = vmax.f32 %v2654, %v2655
    %v2657 = vrot.slane %v2485, 4
    %v2658 = vmax.f32 %v2485, %v2657
    %v2659 = vrot.slane %v2658, 2
    %v2660 = vmax.f32 %v2658, %v2659
    %v2661 = vrot.slane %v2660, 1
    %v2662 = vmax.f32 %v2660, %v2661
    %v2663 = vrot.slane %v2486, 4
    %v2664 = vmax.f32 %v2486, %v2663
    %v2665 = vrot.slane %v2664, 2
    %v2666 = vmax.f32 %v2664, %v2665
    %v2667 = vrot.slane %v2666, 1
    %v2668 = vmax.f32 %v2666, %v2667
    %v2669 = vrot.slane %v2487, 4
    %v2670 = vmax.f32 %v2487, %v2669
    %v2671 = vrot.slane %v2670, 2
    %v2672 = vmax.f32 %v2670, %v2671
    %v2673 = vrot.slane %v2672, 1
    %v2674 = vmax.f32 %v2672, %v2673
    %v2675 = vrot.slane %v2488, 4
    %v2676 = vmax.f32 %v2488, %v2675
    %v2677 = vrot.slane %v2676, 2
    %v2678 = vmax.f32 %v2676, %v2677
    %v2679 = vrot.slane %v2678, 1
    %v2680 = vmax.f32 %v2678, %v2679
    %v2681 = vpack.c.bf16 %v2494, %v2494
    %v2682 = vpack.c.bf16 %v2500, %v2500
    %v2683 = vpack.c.bf16 %v2506, %v2506
    %v2684 = vpack.c.bf16 %v2512, %v2512
    %v2685 = vpack.c.bf16 %v2518, %v2518
    %v2686 = vpack.c.bf16 %v2524, %v2524
    %v2687 = vpack.c.bf16 %v2530, %v2530
    %v2688 = vpack.c.bf16 %v2536, %v2536
    %v2689 = vpack.c.bf16 %v2542, %v2542
    %v2690 = vpack.c.bf16 %v2548, %v2548
    %v2691 = vpack.c.bf16 %v2554, %v2554
    %v2692 = vpack.c.bf16 %v2560, %v2560
    %v2693 = vpack.c.bf16 %v2566, %v2566
    %v2694 = vpack.c.bf16 %v2572, %v2572
    %v2695 = vpack.c.bf16 %v2578, %v2578
    %v2696 = vpack.c.bf16 %v2584, %v2584
    %v2697 = vpack.c.bf16 %v2590, %v2590
    %v2698 = vpack.c.bf16 %v2596, %v2596
    %v2699 = vpack.c.bf16 %v2602, %v2602
    %v2700 = vpack.c.bf16 %v2608, %v2608
    %v2701 = vpack.c.bf16 %v2614, %v2614
    %v2702 = vpack.c.bf16 %v2620, %v2620
    %v2703 = vpack.c.bf16 %v2626, %v2626
    %v2704 = vpack.c.bf16 %v2632, %v2632
    %v2705 = vpack.c.bf16 %v2638, %v2638
    %v2706 = vpack.c.bf16 %v2644, %v2644
    %v2707 = vpack.c.bf16 %v2650, %v2650
    %v2708 = vpack.c.bf16 %v2656, %v2656
    %v2709 = vpack.c.bf16 %v2662, %v2662
    %v2710 = vpack.c.bf16 %v2668, %v2668
    %v2711 = vpack.c.bf16 %v2674, %v2674
    %v2712 = vpack.c.bf16 %v2680, %v2680
    %v2713 = vld [vmem:[%s6] sm:$0xf]
    %v2714 = vld [vmem:[%s6 + $0x4] sm:$0xf]
    %v2715 = vld [vmem:[%s6 + $0x8] sm:$0xf]
    %v2716 = vld [vmem:[%s6 + $0xc] sm:$0xf]
    %v2717 = vld [vmem:[%s6 + $0x10] sm:$0xf]
    %v2718 = vld [vmem:[%s6 + $0x14] sm:$0xf]
    %v2719 = vld [vmem:[%s6 + $0x18] sm:$0xf]
    %v2720 = vld [vmem:[%s6 + $0x1c] sm:$0xf]
    %v2721 = vld [vmem:[%s6 + $0x20] sm:$0xf]
    %v2722 = vld [vmem:[%s6 + $0x24] sm:$0xf]
    %v2723 = vld [vmem:[%s6 + $0x28] sm:$0xf]
    %v2724 = vld [vmem:[%s6 + $0x2c] sm:$0xf]
    %v2725 = vld [vmem:[%s6 + $0x30] sm:$0xf]
    %v2726 = vld [vmem:[%s6 + $0x34] sm:$0xf]
    %v2727 = vld [vmem:[%s6 + $0x38] sm:$0xf]
    %v2728 = vld [vmem:[%s6 + $0x3c] sm:$0xf]
    %v2729 = vld [vmem:[%s7] sm:$0x1]
    %v2731 = vlaneseq
    %v2732 = vshrl.u32 %v2731, 7
    %v2733 = vsub.s32 0, %v2732
    %v2734 = vrot.slane %v2729, %v2733
    %v2768 = vunpack.c.l.b16 %v2681
    %v2769 = vunpack.c.l.b16 %v2682
    %v2770 = vunpack.c.l.b16 %v2683
    %v2771 = vunpack.c.l.b16 %v2684
    %v2772 = vunpack.c.l.b16 %v2685
    %v2773 = vunpack.c.l.b16 %v2686
    %v2774 = vunpack.c.l.b16 %v2687
    %v2775 = vunpack.c.l.b16 %v2688
    %v2776 = vunpack.c.l.b16 %v2689
    %v2777 = vunpack.c.l.b16 %v2690
    %v2778 = vunpack.c.l.b16 %v2691
    %v2779 = vunpack.c.l.b16 %v2692
    %v2780 = vunpack.c.l.b16 %v2693
    %v2781 = vunpack.c.l.b16 %v2694
    %v2782 = vunpack.c.l.b16 %v2695
    %v2783 = vunpack.c.l.b16 %v2696
    %v2784 = vunpack.c.l.b16 %v2697
    %v2785 = vunpack.c.l.b16 %v2698
    %v2786 = vunpack.c.l.b16 %v2699
    %v2787 = vunpack.c.l.b16 %v2700
    %v2788 = vunpack.c.l.b16 %v2701
    %v2789 = vunpack.c.l.b16 %v2702
    %v2790 = vunpack.c.l.b16 %v2703
    %v2791 = vunpack.c.l.b16 %v2704
    %v2792 = vunpack.c.l.b16 %v2705
    %v2793 = vunpack.c.l.b16 %v2706
    %v2794 = vunpack.c.l.b16 %v2707
    %v2795 = vunpack.c.l.b16 %v2708
    %v2796 = vunpack.c.l.b16 %v2709
    %v2797 = vunpack.c.l.b16 %v2710
    %v2798 = vunpack.c.l.b16 %v2711
    %v2799 = vunpack.c.l.b16 %v2712
    %vm2800 = vcmask 1041409
    %v2801 = vsel %vm2800, %v2769, %v2768
    %vm2802 = vcmask 1042434
    %v2803 = vsel %vm2802, %v2770, %v2801
    %vm2804 = vcmask 1043459
    %v2805 = vsel %vm2804, %v2771, %v2803
    %vm2806 = vcmask 1044484
    %v2807 = vsel %vm2806, %v2772, %v2805
    %vm2808 = vcmask 1045509
    %v2809 = vsel %vm2808, %v2773, %v2807
    %vm2810 = vcmask 1046534
    %v2811 = vsel %vm2810, %v2774, %v2809
    %vm2812 = vcmask 1047559
    %v2813 = vsel %vm2812, %v2775, %v2811
    %v2814 = vsel %vm2800, %v2777, %v2776
    %v2815 = vsel %vm2802, %v2778, %v2814
    %v2816 = vsel %vm2804, %v2779, %v2815
    %v2817 = vsel %vm2806, %v2780, %v2816
    %v2818 = vsel %vm2808, %v2781, %v2817
    %v2819 = vsel %vm2810, %v2782, %v2818
    %v2820 = vsel %vm2812, %v2783, %v2819
    %v2821 = vsel %vm2800, %v2785, %v2784
    %v2822 = vsel %vm2802, %v2786, %v2821
    %v2823 = vsel %vm2804, %v2787, %v2822
    %v2824 = vsel %vm2806, %v2788, %v2823
    %v2825 = vsel %vm2808, %v2789, %v2824
    %v2826 = vsel %vm2810, %v2790, %v2825
    %v2827 = vsel %vm2812, %v2791, %v2826
    %v2828 = vsel %vm2800, %v2793, %v2792
    %v2829 = vsel %vm2802, %v2794, %v2828
    %v2830 = vsel %vm2804, %v2795, %v2829
    %v2831 = vsel %vm2806, %v2796, %v2830
    %v2832 = vsel %vm2808, %v2797, %v2831
    %v2833 = vsel %vm2810, %v2798, %v2832
    %v2834 = vsel %vm2812, %v2799, %v2833
    %v2835 = vpack.c.b16 %v2820, %v2813
    %v2836 = vpack.c.b16 %v2834, %v2827
    %v2855 = vunpack.c.l.b16 %v2713
    %v2856 = vunpack.c.l.b16 %v2714
    %v2857 = vunpack.c.l.b16 %v2715
    %v2858 = vunpack.c.l.b16 %v2716
    %v2859 = vunpack.c.l.b16 %v2717
    %v2860 = vunpack.c.l.b16 %v2718
    %v2861 = vunpack.c.l.b16 %v2719
    %v2862 = vunpack.c.l.b16 %v2720
    %v2863 = vunpack.c.l.b16 %v2721
    %v2864 = vunpack.c.l.b16 %v2722
    %v2865 = vunpack.c.l.b16 %v2723
    %v2866 = vunpack.c.l.b16 %v2724
    %v2867 = vunpack.c.l.b16 %v2725
    %v2868 = vunpack.c.l.b16 %v2726
    %v2869 = vunpack.c.l.b16 %v2727
    %v2870 = vunpack.c.l.b16 %v2728
    %v2871 = vpack.c.b16 %v2856, %v2855
    %v2872 = vpack.c.b16 %v2858, %v2857
    %v2873 = vpack.c.b16 %v2860, %v2859
    %v2874 = vpack.c.b16 %v2862, %v2861
    %v2875 = vpack.c.b16 %v2864, %v2863
    %v2876 = vpack.c.b16 %v2866, %v2865
    %v2877 = vpack.c.b16 %v2868, %v2867
    %v2878 = vpack.c.b16 %v2870, %v2869
    %2887 = vmatprep.subr.bf16.mxu0 0
    %2888 = vmatpush1.bf16.msra.mxu0 %v2878
    %2889 = vmatprep.subr.bf16.mxu0 0
    %2890 = vmatpush1.bf16.msra.mxu0 %v2877
    %2891 = vmatprep.subr.bf16.mxu0 0
    %2892 = vmatpush1.bf16.msra.mxu0 %v2876
    %2893 = vmatprep.subr.bf16.mxu0 0
    %2894 = vmatpush1.bf16.msra.mxu0 %v2875
    %2895 = vmatprep.subr.bf16.mxu0 0
    %2896 = vmatpush1.bf16.msra.mxu0 %v2874
    %2897 = vmatprep.subr.bf16.mxu0 0
    %2898 = vmatpush1.bf16.msra.mxu0 %v2873
    %2899 = vmatprep.subr.bf16.mxu0 0
    %2900 = vmatpush1.bf16.msra.mxu0 %v2872
    %2901 = vmatprep.subr.bf16.mxu0 0
    %2902 = vmatpush1.bf16.msra.mxu0 %v2871
    %2903 = vmatprep.subr.bf16.mxu0 0
    %2904 = vmatpush2.bf16.msra.mxu0 0
    %2905 = vmatprep.subr.bf16.mxu0 0
    %2906 = vmatpush2.bf16.msra.mxu0 0
    %2907 = vmatprep.subr.bf16.mxu0 0
    %2908 = vmatpush2.bf16.msra.mxu0 0
    %2909 = vmatprep.subr.bf16.mxu0 0
    %2910 = vmatpush2.bf16.msra.mxu0 0
    %2911 = vmatprep.subr.bf16.mxu0 0
    %2912 = vmatpush2.bf16.msra.mxu0 0
    %2913 = vmatprep.subr.bf16.mxu0 0
    %2914 = vmatpush2.bf16.msra.mxu0 0
    %2915 = vmatprep.subr.bf16.mxu0 0
    %2916 = vmatpush2.bf16.msra.mxu0 0
    %2917 = vmatprep.subr.bf16.mxu0 0
    %2918 = vmatpush2.bf16.msra.mxu0 0
    %2919 = vmatprep.mubr.bf16.mxu0 0
    %2920 = vmatmul.mubr.bf16.gmra.mxu0 %v2835
    %v2921 = vpop.f32.mrf.mxu0
    %v2922 = vadd.f32 %v2734, %v2921
    %v2923 = vpop.f32.mrf.mxu0
    %v2924 = vpop.f32.mrf.mxu0
    %v2925 = vadd.f32 %v2734, %v2924
    %v2926 = vpop.f32.mrf.mxu0
    %2927 = vmatprep.mubr.bf16.mxu0 0
    %2928 = vmatmul.mubr.bf16.gmra.mxu0 %v2836
    %v2929 = vpop.f32.mrf.mxu0
    %v2930 = vadd.f32 %v2734, %v2929
    %v2931 = vpop.f32.mrf.mxu0
    %v2932 = vpop.f32.mrf.mxu0
    %v2933 = vadd.f32 %v2734, %v2932
    %v2934 = vpop.f32.mrf.mxu0
    %2935 = vdwg.mxu0
    %2936 = vst [vmem:[#allocation2] sm:$0xff] %v2922
    %2937 = vst [vmem:[#allocation2 + $0x8] sm:$0xff] %v2925
    %2938 = vst [vmem:[#allocation2 + $0x10] sm:$0xff] %v2930
    %2939 = vst [vmem:[#allocation2 + $0x18] sm:$0xff] %v2933
    // Predicated region
    $region34: #{tpu_custom_call.1} parent=1 // pred_check
      _
    $region35: #{tpu_custom_call.1} parent=1 // pred_check_branch
      %2941 = sbr.rel (0) target = $region37
    $region36: #{tpu_custom_call.1} parent=1 // pred_region
      %s2943 = ssub.s32 512, 512
      %2944 = vsyncadd [#allocation3], %s2943
      %s2945 = sshll.u32 [#allocation2], 4
      %s2946 = int_to_ptr.vmem [resolvable:$true] %s2945
      %2951 = dma.vmem_to_hbm [thread:$0]  %s2946, 512, %s8, [#allocation3], 128, 128, 8
    $region37: #{tpu_custom_call.1} parent=1 // pred_fallthru
      _
    // Predicated region
    $region38: #{tpu_custom_call.1} parent=1 // pred_check
      _
    $region39: #{tpu_custom_call.1} parent=1 // pred_check_branch
      %2953 = sbr.rel (0) target = $region41
    $region40: #{tpu_custom_call.1} parent=1 // pred_region
      %2954 = dma.done [#allocation3], 512
    $region41: #{tpu_custom_call.1} parent=1 // pred_fallthru
      _
    %2955 = vsyncpa [#allocation3], 1

</llo_original>
